<compile_context>
chip_gen: v7x
topology: tpu7x:2x2x1
jax: 0.10.0
libtpu: 0.0.40
codegen_flags: <defaults>
</compile_context>

<pallas_src>
import functools

import jax
import jax.numpy as jnp
from jax import lax
from jax.experimental import pallas as pl
from jax.experimental.pallas import tpu as pltpu


# ----------------------------------------------------------------------------
# Pallas kernel: fused dual-branch 3x3 conv + bias + ReLU for ONE image.
# The conv is computed as 9 accumulating MXU dots, one per tap, each reading a
# lane-shifted static slice of the flattened zero-padded activation slab.
# ----------------------------------------------------------------------------
def _fused_conv_kernel(x_ref, w_ref, b_ref, o_ref, *, cout, lp, wp, pad):
    # x_ref: (Cin, Lp + 2*pad)  flattened (Hp*Wp) zero-padded slab, one image
    # w_ref: (9, Cout, Cin)     per-tap block-diagonal weights (f32 or bf16)
    # b_ref: (Cout, 1)          biases (f32)
    # o_ref: (Cout, Lp)         conv+bias+ReLU on the padded grid (border
    #                           positions are garbage; wrapper slices interior)
    x = x_ref[...]
    acc = jnp.zeros((cout, lp), jnp.float32)
    for t in range(9):                       # static unroll: 9 shifted MXU dots
        kh, kw = t // 3, t % 3
        start = pad + (kh - 1) * wp + (kw - 1)       # lane shift in [-wp-1, wp+1]
        acc = acc + jnp.dot(w_ref[t], x[:, start:start + lp],
                            preferred_element_type=jnp.float32)
    o_ref[...] = jnp.maximum(acc + b_ref[...], 0.0).astype(o_ref.dtype)


# ----------------------------------------------------------------------------
# Parameter init (raw, PyTorch-shaped) and one-time packing (perf feedback #1).
# ----------------------------------------------------------------------------
def init_fea_model_params(key):
    k1, k2, k3, k4 = jax.random.split(key, 4)
    return {
        # rgbdNet1 stand-in: Conv2d(4, 8, 3, padding=1) + ReLU
        "rgbd_w": jax.random.normal(k1, (8, 4, 3, 3), jnp.float32) * 0.1,
        "rgbd_b": jax.random.normal(k2, (8,), jnp.float32) * 0.1,
        # sliceNet stand-in: Conv2d(1, 8, 3, padding=1) + ReLU
        "slice_w": jax.random.normal(k3, (8, 1, 3, 3), jnp.float32) * 0.1,
        "slice_b": jax.random.normal(k4, (8,), jnp.float32) * 0.1,
    }


def pack_fea_model_params(raw, compute_dtype=jnp.float32):
    """Build the per-tap block-diagonal weight pack ONCE (not per forward).

    compute_dtype=jnp.bfloat16 feeds the MXU bf16 operands (v6e/v7x peak);
    accumulation stays f32 inside the kernel.
    """
    w1, b1 = raw["rgbd_w"], raw["rgbd_b"]
    w2, b2 = raw["slice_w"], raw["slice_b"]
    co1, ci1 = w1.shape[0], w1.shape[1]
    co2, ci2 = w2.shape[0], w2.shape[1]
    cout, cin = co1 + co2, ci1 + ci2

    w_taps = jnp.zeros((9, cout, cin), jnp.float32)
    # tap order t = kh*3 + kw  — must match the kernel's shift derivation
    w_taps = w_taps.at[:, :co1, :ci1].set(
        w1.transpose(2, 3, 0, 1).reshape(9, co1, ci1))
    w_taps = w_taps.at[:, co1:, ci1:].set(
        w2.transpose(2, 3, 0, 1).reshape(9, co2, ci2))
    bias = jnp.concatenate([b1, b2]).reshape(cout, 1).astype(jnp.float32)
    return {"w_taps": w_taps.astype(compute_dtype), "bias": bias}


# ----------------------------------------------------------------------------
# Forward: light layout plumbing + one pallas_call (grid over batch).
# ----------------------------------------------------------------------------
def fea_model_forward_impl(params, x1, x2, cout1):
    n, c1, h, w = x1.shape
    n2, c2, h2, w2 = x2.shape
    assert (n, h, w) == (n2, h2, w2), "branches must share batch/spatial dims"

    w_taps = params["w_taps"]                # (9, Cout, Cin)
    bias = params["bias"]                    # (Cout, 1), f32
    cout, cin = w_taps.shape[1], w_taps.shape[2]
    assert cin == c1 + c2

    hp, wp = h + 2, w + 2
    lp = hp * wp                             # flattened padded spatial size
    pad = wp + 1                             # max |lane shift| over the 9 taps

    # Activation plumbing (no arithmetic, ~1.3x input bytes; read once by DMA).
    x = jnp.concatenate([x1, x2], axis=1)                     # (N, Cin, H, W)
    x = jnp.pad(x, ((0, 0), (0, 0), (1, 1), (1, 1)))          # (N, Cin, Hp, Wp)
    x = x.reshape(n, cin, lp)                                  # (N, Cin, Lp)
    x = jnp.pad(x, ((0, 0), (0, 0), (pad, pad)))               # (N, Cin, Lp+2*pad)
    x = x.astype(w_taps.dtype)                                 # bf16 if packed so

    kernel = functools.partial(
        _fused_conv_kernel, cout=cout, lp=lp, wp=wp, pad=pad)

    itemsize = jnp.dtype(x.dtype).itemsize
    cost = pl.CostEstimate(
        flops=2 * cout * (9 * cin) * n * h * w,
        transcendentals=0,
        bytes_accessed=(x.size * itemsize
                        + w_taps.size * jnp.dtype(w_taps.dtype).itemsize
                        + bias.size * 4
                        + n * cout * lp * jnp.dtype(x1.dtype).itemsize))

    out = pl.pallas_call(
        kernel,
        out_shape=jax.ShapeDtypeStruct((n, cout, lp), x1.dtype),
        grid_spec=pltpu.PrefetchScalarGridSpec(
            num_scalar_prefetch=0,
            grid=(n,),
            in_specs=[
                pl.BlockSpec((None, cin, lp + 2 * pad), lambda i: (i, 0, 0)),
                pl.BlockSpec((9, cout, cin), lambda i: (0, 0, 0)),
                pl.BlockSpec((cout, 1), lambda i: (0, 0)),
            ],
            out_specs=pl.BlockSpec((None, cout, lp), lambda i: (i, 0, 0)),
        ),
        compiler_params=pltpu.CompilerParams(
            dimension_semantics=("parallel",)),
        cost_estimate=cost,
    )(x, w_taps, bias)

    # Unpack to the module's (N, C, H, W) outputs.
    # TODO(synk): if downstream consumers are matmul-like, return the lane-dense
    #             (N, Cout, Lp) slab instead of slicing back to NCHW.
    o = out.reshape(n, cout, hp, wp)[:, :, 1:h + 1, 1:w + 1]   # (N, Cout, H, W)
    return o[:, :cout1], o[:, cout1:]


@functools.partial(jax.jit, static_argnames=("cout1",))
def fea_model_forward(params, x1, x2, cout1=8):
    return fea_model_forward_impl(params, x1, x2, cout1)


# Pure-JAX reference for validation.
def _conv_ref(x_nchw, w_oihw, b):
    y = lax.conv_general_dilated(
        x_nchw, w_oihw,
        window_strides=(1, 1),
        padding=((1, 1), (1, 1)),
        dimension_numbers=("NCHW", "OIHW", "NCHW"),
    )
    return jnp.maximum(y + b.reshape(1, -1, 1, 1), 0.0)


if __name__ == "__main__":
    key = jax.random.PRNGKey(0)
    kp, kx1, kx2 = jax.random.split(key, 3)

    raw_params = init_fea_model_params(kp)

    # x1: RGB-D image (N, 4, H, W); x2: single-channel slice (N, 1, H, W)
    x1 = jax.random.normal(kx1, (2, 4, 16, 16), jnp.float32)
    x2 = jax.random.normal(kx2, (2, 1, 16, 16), jnp.float32)

    r1 = _conv_ref(x1, raw_params["rgbd_w"], raw_params["rgbd_b"])
    r2 = _conv_ref(x2, raw_params["slice_w"], raw_params["slice_b"])

    # --- f32 operand path (default; exact on all generations) ---
    packed = pack_fea_model_params(raw_params)        # packed once, outside jit
    y1, y2 = fea_model_forward(packed, x1, x2)
    jax.block_until_ready((y1, y2))
    assert y1.shape == r1.shape and y2.shape == r2.shape
    assert jnp.allclose(y1, r1, atol=1e-4, rtol=1e-4)
    assert jnp.allclose(y2, r2, atol=1e-4, rtol=1e-4)

    # --- bf16 MXU-operand path (v6e/v7x peak), f32 accumulation ---
    packed_bf16 = pack_fea_model_params(raw_params, compute_dtype=jnp.bfloat16)
    z1, z2 = fea_model_forward(packed_bf16, x1, x2)
    jax.block_until_ready((z1, z2))
    assert jnp.allclose(z1, r1, atol=3e-2, rtol=3e-2)
    assert jnp.allclose(z2, r2, atol=3e-2, rtol=3e-2)

    print("KERNEL_OK")
</pallas_src>

<mosaic_0001>
module attributes {stable_mosaic.version = 11 : i64} {
  func.func @_fused_conv_kernel(%arg0: i32, %arg1: memref<1x5x362xf32, #tpu.memory_space<vmem>>, %arg2: memref<9x16x5xf32, #tpu.memory_space<vmem>>, %arg3: memref<16x1xf32, #tpu.memory_space<vmem>>, %arg4: memref<1x16x324xf32, #tpu.memory_space<vmem>>) attributes {dimension_semantics = [#tpu.dimension_semantics<parallel>], iteration_bounds = array<i64: 2>, scalar_prefetch = 0 : i64, scratch_operands = 0 : i64, tpu.core_type = #tpu.core_type<tc>, window_params = [{transform_indices = @transform_0, window_bounds = array<i64: 1, 5, 362>}, {pipeline_mode = #tpu.pipeline_mode<synchronous>, transform_indices = @transform_1, window_bounds = array<i64: 9, 16, 5>}, {pipeline_mode = #tpu.pipeline_mode<synchronous>, transform_indices = @transform_2, window_bounds = array<i64: 16, 1>}, {transform_indices = @transform_3, window_bounds = array<i64: 1, 16, 324>}]} {
    %c0 = arith.constant 0 : index
    %c0_0 = arith.constant 0 : index
    %c0_1 = arith.constant 0 : index
    %0 = vector.load %arg1[%c0, %c0_0, %c0_1] : memref<1x5x362xf32, #tpu.memory_space<vmem>>, vector<1x5x362xf32>
    %1 = vector.shape_cast %0 : vector<1x5x362xf32> to vector<5x362xf32>
    %cst = arith.constant 0.000000e+00 : f32
    %2 = vector.broadcast %cst : f32 to vector<16x324xf32>
    %c0_2 = arith.constant 0 : index
    %c0_3 = arith.constant 0 : index
    %c0_4 = arith.constant 0 : index
    %3 = vector.load %arg2[%c0_2, %c0_3, %c0_4] : memref<9x16x5xf32, #tpu.memory_space<vmem>>, vector<1x16x5xf32>
    %4 = vector.shape_cast %3 : vector<1x16x5xf32> to vector<16x5xf32>
    %5 = vector.extract_strided_slice %1 {offsets = [0, 0], sizes = [5, 324], strides = [1, 1]} : vector<5x362xf32> to vector<5x324xf32>
    %cst_5 = arith.constant dense<0.000000e+00> : vector<16x324xf32>
    %6 = tpu.matmul %4, %5, %cst_5 {dimension_numbers = #tpu.dot_dimension_numbers<[1], [0], [0], [1], [0, 0, 1, 1], [], []>} : vector<16x5xf32>, vector<5x324xf32>, vector<16x324xf32> -> vector<16x324xf32>
    %7 = arith.addf %2, %6 : vector<16x324xf32>
    %c1 = arith.constant 1 : index
    %c0_6 = arith.constant 0 : index
    %c0_7 = arith.constant 0 : index
    %8 = vector.load %arg2[%c1, %c0_6, %c0_7] : memref<9x16x5xf32, #tpu.memory_space<vmem>>, vector<1x16x5xf32>
    %9 = vector.shape_cast %8 : vector<1x16x5xf32> to vector<16x5xf32>
    %10 = vector.extract_strided_slice %1 {offsets = [0, 1], sizes = [5, 324], strides = [1, 1]} : vector<5x362xf32> to vector<5x324xf32>
    %cst_8 = arith.constant dense<0.000000e+00> : vector<16x324xf32>
    %11 = tpu.matmul %9, %10, %cst_8 {dimension_numbers = #tpu.dot_dimension_numbers<[1], [0], [0], [1], [0, 0, 1, 1], [], []>} : vector<16x5xf32>, vector<5x324xf32>, vector<16x324xf32> -> vector<16x324xf32>
    %12 = arith.addf %7, %11 : vector<16x324xf32>
    %c2 = arith.constant 2 : index
    %c0_9 = arith.constant 0 : index
    %c0_10 = arith.constant 0 : index
    %13 = vector.load %arg2[%c2, %c0_9, %c0_10] : memref<9x16x5xf32, #tpu.memory_space<vmem>>, vector<1x16x5xf32>
    %14 = vector.shape_cast %13 : vector<1x16x5xf32> to vector<16x5xf32>
    %15 = vector.extract_strided_slice %1 {offsets = [0, 2], sizes = [5, 324], strides = [1, 1]} : vector<5x362xf32> to vector<5x324xf32>
    %cst_11 = arith.constant dense<0.000000e+00> : vector<16x324xf32>
    %16 = tpu.matmul %14, %15, %cst_11 {dimension_numbers = #tpu.dot_dimension_numbers<[1], [0], [0], [1], [0, 0, 1, 1], [], []>} : vector<16x5xf32>, vector<5x324xf32>, vector<16x324xf32> -> vector<16x324xf32>
    %17 = arith.addf %12, %16 : vector<16x324xf32>
    %c3 = arith.constant 3 : index
    %c0_12 = arith.constant 0 : index
    %c0_13 = arith.constant 0 : index
    %18 = vector.load %arg2[%c3, %c0_12, %c0_13] : memref<9x16x5xf32, #tpu.memory_space<vmem>>, vector<1x16x5xf32>
    %19 = vector.shape_cast %18 : vector<1x16x5xf32> to vector<16x5xf32>
    %20 = vector.extract_strided_slice %1 {offsets = [0, 18], sizes = [5, 324], strides = [1, 1]} : vector<5x362xf32> to vector<5x324xf32>
    %cst_14 = arith.constant dense<0.000000e+00> : vector<16x324xf32>
    %21 = tpu.matmul %19, %20, %cst_14 {dimension_numbers = #tpu.dot_dimension_numbers<[1], [0], [0], [1], [0, 0, 1, 1], [], []>} : vector<16x5xf32>, vector<5x324xf32>, vector<16x324xf32> -> vector<16x324xf32>
    %22 = arith.addf %17, %21 : vector<16x324xf32>
    %c4 = arith.constant 4 : index
    %c0_15 = arith.constant 0 : index
    %c0_16 = arith.constant 0 : index
    %23 = vector.load %arg2[%c4, %c0_15, %c0_16] : memref<9x16x5xf32, #tpu.memory_space<vmem>>, vector<1x16x5xf32>
    %24 = vector.shape_cast %23 : vector<1x16x5xf32> to vector<16x5xf32>
    %25 = vector.extract_strided_slice %1 {offsets = [0, 19], sizes = [5, 324], strides = [1, 1]} : vector<5x362xf32> to vector<5x324xf32>
    %cst_17 = arith.constant dense<0.000000e+00> : vector<16x324xf32>
    %26 = tpu.matmul %24, %25, %cst_17 {dimension_numbers = #tpu.dot_dimension_numbers<[1], [0], [0], [1], [0, 0, 1, 1], [], []>} : vector<16x5xf32>, vector<5x324xf32>, vector<16x324xf32> -> vector<16x324xf32>
    %27 = arith.addf %22, %26 : vector<16x324xf32>
    %c5 = arith.constant 5 : index
    %c0_18 = arith.constant 0 : index
    %c0_19 = arith.constant 0 : index
    %28 = vector.load %arg2[%c5, %c0_18, %c0_19] : memref<9x16x5xf32, #tpu.memory_space<vmem>>, vector<1x16x5xf32>
    %29 = vector.shape_cast %28 : vector<1x16x5xf32> to vector<16x5xf32>
    %30 = vector.extract_strided_slice %1 {offsets = [0, 20], sizes = [5, 324], strides = [1, 1]} : vector<5x362xf32> to vector<5x324xf32>
    %cst_20 = arith.constant dense<0.000000e+00> : vector<16x324xf32>
    %31 = tpu.matmul %29, %30, %cst_20 {dimension_numbers = #tpu.dot_dimension_numbers<[1], [0], [0], [1], [0, 0, 1, 1], [], []>} : vector<16x5xf32>, vector<5x324xf32>, vector<16x324xf32> -> vector<16x324xf32>
    %32 = arith.addf %27, %31 : vector<16x324xf32>
    %c6 = arith.constant 6 : index
    %c0_21 = arith.constant 0 : index
    %c0_22 = arith.constant 0 : index
    %33 = vector.load %arg2[%c6, %c0_21, %c0_22] : memref<9x16x5xf32, #tpu.memory_space<vmem>>, vector<1x16x5xf32>
    %34 = vector.shape_cast %33 : vector<1x16x5xf32> to vector<16x5xf32>
    %35 = vector.extract_strided_slice %1 {offsets = [0, 36], sizes = [5, 324], strides = [1, 1]} : vector<5x362xf32> to vector<5x324xf32>
    %cst_23 = arith.constant dense<0.000000e+00> : vector<16x324xf32>
    %36 = tpu.matmul %34, %35, %cst_23 {dimension_numbers = #tpu.dot_dimension_numbers<[1], [0], [0], [1], [0, 0, 1, 1], [], []>} : vector<16x5xf32>, vector<5x324xf32>, vector<16x324xf32> -> vector<16x324xf32>
    %37 = arith.addf %32, %36 : vector<16x324xf32>
    %c7 = arith.constant 7 : index
    %c0_24 = arith.constant 0 : index
    %c0_25 = arith.constant 0 : index
    %38 = vector.load %arg2[%c7, %c0_24, %c0_25] : memref<9x16x5xf32, #tpu.memory_space<vmem>>, vector<1x16x5xf32>
    %39 = vector.shape_cast %38 : vector<1x16x5xf32> to vector<16x5xf32>
    %40 = vector.extract_strided_slice %1 {offsets = [0, 37], sizes = [5, 324], strides = [1, 1]} : vector<5x362xf32> to vector<5x324xf32>
    %cst_26 = arith.constant dense<0.000000e+00> : vector<16x324xf32>
    %41 = tpu.matmul %39, %40, %cst_26 {dimension_numbers = #tpu.dot_dimension_numbers<[1], [0], [0], [1], [0, 0, 1, 1], [], []>} : vector<16x5xf32>, vector<5x324xf32>, vector<16x324xf32> -> vector<16x324xf32>
    %42 = arith.addf %37, %41 : vector<16x324xf32>
    %c8 = arith.constant 8 : index
    %c0_27 = arith.constant 0 : index
    %c0_28 = arith.constant 0 : index
    %43 = vector.load %arg2[%c8, %c0_27, %c0_28] : memref<9x16x5xf32, #tpu.memory_space<vmem>>, vector<1x16x5xf32>
    %44 = vector.shape_cast %43 : vector<1x16x5xf32> to vector<16x5xf32>
    %45 = vector.extract_strided_slice %1 {offsets = [0, 38], sizes = [5, 324], strides = [1, 1]} : vector<5x362xf32> to vector<5x324xf32>
    %cst_29 = arith.constant dense<0.000000e+00> : vector<16x324xf32>
    %46 = tpu.matmul %44, %45, %cst_29 {dimension_numbers = #tpu.dot_dimension_numbers<[1], [0], [0], [1], [0, 0, 1, 1], [], []>} : vector<16x5xf32>, vector<5x324xf32>, vector<16x324xf32> -> vector<16x324xf32>
    %47 = arith.addf %42, %46 : vector<16x324xf32>
    %c0_30 = arith.constant 0 : index
    %c0_31 = arith.constant 0 : index
    %48 = vector.load %arg3[%c0_30, %c0_31] : memref<16x1xf32, #tpu.memory_space<vmem>>, vector<16x1xf32>
    %49 = vector.broadcast %48 : vector<16x1xf32> to vector<16x324xf32>
    %50 = arith.addf %47, %49 : vector<16x324xf32>
    %cst_32 = arith.constant 0.000000e+00 : f32
    %51 = vector.broadcast %cst_32 : f32 to vector<16x324xf32>
    %52 = arith.maximumf %50, %51 : vector<16x324xf32>
    %c0_33 = arith.constant 0 : index
    %c0_34 = arith.constant 0 : index
    %c0_35 = arith.constant 0 : index
    %53 = vector.load %arg4[%c0_33, %c0_34, %c0_35] : memref<1x16x324xf32, #tpu.memory_space<vmem>>, vector<1x16x324xf32>
    %54 = vector.shape_cast %53 : vector<1x16x324xf32> to vector<16x324xf32>
    %55 = vector.shape_cast %52 : vector<16x324xf32> to vector<1x16x324xf32>
    tpu.vector_store %arg4[%c0_33, %c0_34, %c0_35], %55 {strides = array<i32>} : memref<1x16x324xf32, #tpu.memory_space<vmem>>, vector<1x16x324xf32>,
    return
  }
  func.func @transform_0(%arg0: i32) -> (i32, i32, i32) {
    %c0_i32 = arith.constant 0 : i32
    %c0_i32_0 = arith.constant 0 : i32
    %c0_i32_1 = arith.constant 0 : i32
    return %arg0, %c0_i32, %c0_i32_0 : i32, i32, i32
  }
  func.func @transform_1(%arg0: i32) -> (i32, i32, i32) {
    %c0_i32 = arith.constant 0 : i32
    %c0_i32_0 = arith.constant 0 : i32
    %c0_i32_1 = arith.constant 0 : i32
    %c0_i32_2 = arith.constant 0 : i32
    return %c0_i32, %c0_i32_0, %c0_i32_1 : i32, i32, i32
  }
  func.func @transform_2(%arg0: i32) -> (i32, i32) {
    %c0_i32 = arith.constant 0 : i32
    %c0_i32_0 = arith.constant 0 : i32
    %c0_i32_1 = arith.constant 0 : i32
    return %c0_i32, %c0_i32_0 : i32, i32
  }
  func.func @transform_3(%arg0: i32) -> (i32, i32, i32) {
    %c0_i32 = arith.constant 0 : i32
    %c0_i32_0 = arith.constant 0 : i32
    %c0_i32_1 = arith.constant 0 : i32
    return %arg0, %c0_i32, %c0_i32_0 : i32, i32, i32
  }
}

</mosaic_0001>

<llo_original>
// kernel: fea_model_forward.1
$region0: #{fea_model_forward.1}
  #allocation0 [shape = 'u32[]', space=smem, size = 0x4, offset = 0x4, fixed_abs, tag = 'smem constant byte address 0x4 - core index']
  #allocation1 [shape = 'u32[144,128]{1,0:T(1,128)}', space=vmem, size = 0x12000, scoped, tag = 'internal scratch']
  %s0 = inlined_call_operand.vmem [shape: f32[2,5,362], index: 0, kind: input, shape index: {}]
  %s1 = inlined_call_operand.vmem [shape: f32[9,16,5], index: 1, kind: input, shape index: {}]
  %s2 = inlined_call_operand.vmem [shape: f32[16,1], index: 2, kind: input, shape index: {}]
  %s3 = inlined_call_operand.vmem [shape: f32[2,16,324], index: 3, kind: output, shape index: {}]
  %s4 = sld [smem:[#allocation0]]
  $region45: #{fea_model_forward.1} parent=0
    _
  %s6 = ssub.s32 1, %s4
  %s7 = scalar_select 0, %s6, %s4
  loop: start=0, step=1, limit=4
  $region2: #{fea_model_forward.1} parent=0 // loop_pre_header
    _
  $region3: #{fea_model_forward.1} parent=0 // loop_header
    %s9 = sphi 0, %s13
    %p10 = scmp.ge.s32.totalorder %s9, 4
    %s19 = sphi 0, %s21
    %s22 = sphi 0, %s19
    %s23 = sphi 0, %s22
    %s39 = sphi 0, %s23
    %s43 = sphi 0, %s43
    %s45 = sphi 0, %s43
    %s46 = sphi 0, %s45
    %s60 = sphi 0, %s46
    %s64 = sphi 0, %s64
    %s66 = sphi 0, %s64
    %s67 = sphi 0, %s66
    %s81 = sphi 0, %s67
    %s87 = sphi 0, %s89
    %s90 = sphi 0, %s87
    %s91 = sphi 0, %s90
    %s107 = sphi 0, %s91
  $region4: #{fea_model_forward.1} parent=0 // loop_header_branch
    %12 = sbr.rel (%p10) target = $region8
  $region5: #{fea_model_forward.1} parent=0 // loop_body
    %s14 = ssub.s32 %s9, 1
    %s15 = ssub.s32 %s9, 2
    %s16 = sadd.s32 %s9, 1
    %s17 = ssub.s32 %s9, %s16
    %p18 = scmp.eq.s32.totalorder %s17, 0
    %s20 = sadd.s32 %s19, 1
    %s21 = scalar_select %p18, %s19, %s20
    %p24 = pneg %p18
    %p25 = scmp.eq.s32.totalorder %s9, 1
    %p26 = por %p24, %p25
    %p27 = scmp.ne.s32.totalorder %s19, %s22
    %p28 = scmp.eq.s32.totalorder %s9, 0
    %p29 = por %p27, %p28
    %p30 = scmp.ne.s32.totalorder %s19, %s22
    %p31 = scmp.eq.s32.totalorder %s14, 1
    %p32 = por %p30, %p31
    %p33 = scmp.ne.s32.totalorder %s22, %s23
    %p34 = scmp.eq.s32.totalorder %s14, 0
    %p35 = por %p33, %p34
    %p36 = scmp.ne.s32.totalorder %s22, %s23
    %p37 = scmp.eq.s32.totalorder %s15, 1
    %p38 = por %p36, %p37
    %p40 = scmp.ne.s32.totalorder %s23, %s39
    %p41 = scmp.eq.s32.totalorder %s15, 0
    %p42 = por %p40, %p41
    %s44 = sadd.s32 %s43, 1
    %p47 = scmp.eq.s32.totalorder %s9, 1
    %p48 = scmp.ne.s32.totalorder %s43, %s45
    %p49 = scmp.eq.s32.totalorder %s9, 0
    %p50 = por %p48, %p49
    %p51 = scmp.ne.s32.totalorder %s43, %s45
    %p52 = scmp.eq.s32.totalorder %s14, 1
    %p53 = por %p51, %p52
    %p54 = scmp.ne.s32.totalorder %s45, %s46
    %p55 = scmp.eq.s32.totalorder %s14, 0
    %p56 = por %p54, %p55
    %p57 = scmp.ne.s32.totalorder %s45, %s46
    %p58 = scmp.eq.s32.totalorder %s15, 1
    %p59 = por %p57, %p58
    %p61 = scmp.ne.s32.totalorder %s46, %s60
    %p62 = scmp.eq.s32.totalorder %s15, 0
    %p63 = por %p61, %p62
    %s65 = sadd.s32 %s64, 1
    %p68 = scmp.eq.s32.totalorder %s9, 1
    %p69 = scmp.ne.s32.totalorder %s64, %s66
    %p70 = scmp.eq.s32.totalorder %s9, 0
    %p71 = por %p69, %p70
    %p72 = scmp.ne.s32.totalorder %s64, %s66
    %p73 = scmp.eq.s32.totalorder %s14, 1
    %p74 = por %p72, %p73
    %p75 = scmp.ne.s32.totalorder %s66, %s67
    %p76 = scmp.eq.s32.totalorder %s14, 0
    %p77 = por %p75, %p76
    %p78 = scmp.ne.s32.totalorder %s66, %s67
    %p79 = scmp.eq.s32.totalorder %s15, 1
    %p80 = por %p78, %p79
    %p82 = scmp.ne.s32.totalorder %s67, %s81
    %p83 = scmp.eq.s32.totalorder %s15, 0
    %p84 = por %p82, %p83
    %s85 = ssub.s32 %s9, %s16
    %p86 = scmp.eq.s32.totalorder %s85, 0
    %s88 = sadd.s32 %s87, 1
    %s89 = scalar_select %p86, %s87, %s88
    %p92 = pneg %p86
    %p93 = scmp.eq.s32.totalorder %s9, 1
    %p94 = por %p92, %p93
    %p95 = scmp.ne.s32.totalorder %s87, %s90
    %p96 = scmp.eq.s32.totalorder %s9, 0
    %p97 = por %p95, %p96
    %p98 = scmp.ne.s32.totalorder %s87, %s90
    %p99 = scmp.eq.s32.totalorder %s14, 1
    %p100 = por %p98, %p99
    %p101 = scmp.ne.s32.totalorder %s90, %s91
    %p102 = scmp.eq.s32.totalorder %s14, 0
    %p103 = por %p101, %p102
    %p104 = scmp.ne.s32.totalorder %s90, %s91
    %p105 = scmp.eq.s32.totalorder %s15, 1
    %p106 = por %p104, %p105
    %p108 = scmp.ne.s32.totalorder %s91, %s107
    %p109 = scmp.eq.s32.totalorder %s15, 0
    %p110 = por %p108, %p109
    %p111 = scmp.le.s32.totalorder 1, %s9
    %p112 = scmp.lt.s32.totalorder %s9, 3
    %p113 = pnand %p111, %p112
    %p114 = pneg %p113
    // Predicated region
    $region9: #{fea_model_forward.1} parent=5 // pred_check
      _
    $region10: #{fea_model_forward.1} parent=5 // pred_check_branch
      %116 = sbr.rel (%p113) target = $region12
    $region11: #{fea_model_forward.1} parent=5 // pred_region
      %s117 = ssub.s32 %s9, 1
      // Predicated region
      $region13: #{fea_model_forward.1} parent=11 // pred_check
        %p118 = pneg %p56
      $region14: #{fea_model_forward.1} parent=11 // pred_check_branch
        %120 = sbr.rel (%p118) target = $region16
      $region15: #{fea_model_forward.1} parent=11 // pred_region
        _
      $region16: #{fea_model_forward.1} parent=11 // pred_fallthru
        _
      // Predicated region
      $region17: #{fea_model_forward.1} parent=11 // pred_check
        %p121 = pneg %p77
      $region18: #{fea_model_forward.1} parent=11 // pred_check_branch
        %123 = sbr.rel (%p121) target = $region20
      $region19: #{fea_model_forward.1} parent=11 // pred_region
        _
      $region20: #{fea_model_forward.1} parent=11 // pred_fallthru
        _
    $region12: #{fea_model_forward.1} parent=5 // pred_fallthru
      _
    %p124 = scmp.lt.s32.totalorder %s9, 2
    // Predicated region
    $region21: #{fea_model_forward.1} parent=5 // pred_check
      %p125 = pneg %p124
    $region22: #{fea_model_forward.1} parent=5 // pred_check_branch
      %127 = sbr.rel (%p125) target = $region24
    $region23: #{fea_model_forward.1} parent=5 // pred_region
      // Predicated region
      $region25: #{fea_model_forward.1} parent=23 // pred_check
        %p128 = pneg %p29
      $region26: #{fea_model_forward.1} parent=23 // pred_check_branch
        %130 = sbr.rel (%p128) target = $region28
      $region27: #{fea_model_forward.1} parent=23 // pred_region
        %p131 = scmp.lt.s32.totalorder %s9, 1
        %s132 = scalar_select %p131, %s9, 1
        %s133 = smul.addr %s132, 3
        %s134 = smul.addr %s133, 8
        %s135 = scalar_lea.vmem %s0, %s134
      $region28: #{fea_model_forward.1} parent=23 // pred_fallthru
        _
    $region24: #{fea_model_forward.1} parent=5 // pred_fallthru
      _
    %p136 = scmp.le.s32.totalorder 1, %s9
    %p137 = scmp.lt.s32.totalorder %s9, 3
    %p138 = pnand %p136, %p137
    %p139 = pneg %p138
    // Predicated region
    $region29: #{fea_model_forward.1} parent=5 // pred_check
      _
    $region30: #{fea_model_forward.1} parent=5 // pred_check_branch
      %141 = sbr.rel (%p138) target = $region32
    $region31: #{fea_model_forward.1} parent=5 // pred_region
      %s142 = ssub.s32 %s9, 1
      %p143 = scmp.lt.s32.totalorder %s14, 1
      %s144 = scalar_select %p143, %s14, 1
      %s145 = smul.addr %s144, 3
      %s146 = smul.addr %s145, 8
      %s147 = scalar_lea.vmem %s0, %s146
      %p148 = pneg %p35
      %p149 = pneg %p32
      %p150 = pneg %p56
      %p151 = pneg %p53
      %p152 = pneg %p77
      %p153 = pneg %p74
      %p154 = pneg %p103
      %p155 = pneg %p100
      %p156 = scmp.lt.s32.totalorder %s14, 1
      %s157 = scalar_select %p156, %s14, 1
      %s158 = smul.addr %s157, 6
      %s159 = smul.addr %s158, 8
      %s160 = scalar_lea.vmem %s3, %s159
      %p161 = scmp.lt.s32.totalorder %s14, 1
      %s162 = scalar_select %p161, %s14, 1
      %s163 = smul.addr %s162, 3
      %s164 = smul.addr %s163, 8
      %s165 = scalar_lea.vmem %s0, %s164
      %p166 = scmp.lt.s32.totalorder %s14, 1
      %s167 = scalar_select %p166, %s14, 1
      %s168 = smul.addr %s167, 6
      %s169 = smul.addr %s168, 8
      %s170 = scalar_lea.vmem %s3, %s169
      %v171 = vld [vmem:[%s165] sm:$0x1f]
      %v172 = vld [vmem:[%s165 + $0x8] sm:$0x1f]
      %v173 = vld [vmem:[%s165 + $0x10] sm:$0x1f]
      %v174 = vld [vmem:[%s1] sm:$0xff]
      %v175 = vld [vmem:[%s1 + $0x8] sm:$0xff]
      %s176 = scalar_lea.vmem %s1, 16
      %v177 = vld [vmem:[%s176] sm:$0xff]
      %v178 = vld [vmem:[%s176 + $0x8] sm:$0xff]
      %182 = vrot.lane.b32.xlu0 %v171, 127
      %v183 = vpop.permute.xlu0 %182
      %184 = vrot.lane.b32.xlu0 %v172, 127
      %v185 = vpop.permute.xlu0 %184
      %186 = vrot.lane.b32.xlu0 %v173, 127
      %v187 = vpop.permute.xlu0 %186
      %vm188 = vcmask 1039360
      %v189 = vsel %vm188, %v183, %v185
      %v190 = vsel %vm188, %v185, %v187
      %vm191 = vcmask 39936
      %v193 = vsel %vm191, %v177, 0
      %v196 = vsel %vm191, %v178, 0
      %vm198 = vcmask 1044480
      %v199 = vsel %vm198, %v189, 0
      %v201 = vsel %vm198, %v190, 0
      %v203 = vsel %vm198, %v187, 0
      %205 = vmatprep.subr.mxu0 %v201
      %206 = vmatpush1.msra.mxu0 %v199
      %207 = vmatprep.subr.mxu0 0.0
      %208 = vmatpush1.msra.mxu0 0.0
      %209 = vmatprep.subr.mxu0 0.0
      %210 = vmatpush1.msra.mxu0 0.0
      %211 = vmatprep.subr.mxu0 0.0
      %212 = vmatpush1.msra.mxu0 0.0
      %213 = vmatprep.subr.mxu0 0.0
      %214 = vmatpush1.msra.mxu0 0.0
      %215 = vmatprep.subr.mxu0 0.0
      %216 = vmatpush1.msra.mxu0 0.0
      %217 = vmatprep.subr.mxu0 0.0
      %218 = vmatpush1.msra.mxu0 0.0
      %219 = vmatprep.subr.mxu0 0.0
      %220 = vmatpush1.msra.mxu0 0.0
      %221 = vmatprep.subr.mxu0 0.0
      %222 = vmatpush1.msra.mxu0 0.0
      %223 = vmatprep.subr.mxu0 0.0
      %224 = vmatpush1.msra.mxu0 0.0
      %225 = vmatprep.subr.mxu0 0.0
      %226 = vmatpush1.msra.mxu0 0.0
      %227 = vmatprep.subr.mxu0 0.0
      %228 = vmatpush1.msra.mxu0 0.0
      %229 = vmatprep.subr.mxu0 0.0
      %230 = vmatpush1.msra.mxu0 0.0
      %231 = vmatprep.subr.mxu0 0.0
      %232 = vmatpush1.msra.mxu0 0.0
      %233 = vmatprep.subr.mxu0 0.0
      %234 = vmatpush1.msra.mxu0 0.0
      %235 = vmatprep.subr.mxu0 0.0
      %236 = vmatpush1.msra.mxu0 0.0
      %237 = vmatprep.subr.mxu0 0.0
      %238 = vmatpush1.msra.mxu0 0.0
      %239 = vmatprep.subr.mxu0 0.0
      %240 = vmatpush1.msra.mxu0 0.0
      %241 = vmatprep.subr.mxu0 0.0
      %242 = vmatpush1.msra.mxu0 0.0
      %243 = vmatprep.subr.mxu0 0.0
      %244 = vmatpush1.msra.mxu0 0.0
      %245 = vmatprep.subr.mxu0 0.0
      %246 = vmatpush1.msra.mxu0 0.0
      %247 = vmatprep.subr.mxu0 0.0
      %248 = vmatpush1.msra.mxu0 0.0
      %249 = vmatprep.subr.mxu0 0.0
      %250 = vmatpush1.msra.mxu0 0.0
      %251 = vmatprep.subr.mxu0 0.0
      %252 = vmatpush1.msra.mxu0 0.0
      %253 = vmatprep.subr.mxu0 0.0
      %254 = vmatpush1.msra.mxu0 0.0
      %255 = vmatprep.subr.mxu0 0.0
      %256 = vmatpush1.msra.mxu0 0.0
      %257 = vmatprep.subr.mxu0 0.0
      %258 = vmatpush1.msra.mxu0 0.0
      %259 = vmatprep.subr.mxu0 0.0
      %260 = vmatpush1.msra.mxu0 0.0
      %261 = vmatprep.subr.mxu0 0.0
      %262 = vmatpush1.msra.mxu0 0.0
      %263 = vmatprep.subr.mxu0 0.0
      %264 = vmatpush1.msra.mxu0 0.0
      %265 = vmatprep.subr.mxu0 0.0
      %266 = vmatpush1.msra.mxu0 0.0
      %267 = vmatprep.subr.mxu0 0.0
      %268 = vmatpush1.msra.mxu0 0.0
      %269 = vmatprep.mubr.f32.mxu0 0.0
      %270 = vmatmul.mubr.f32.gmra.mrb[0].mxu0 %v193
      %v271 = vpop.f32.mrb[0].mxu0
      %v272 = vadd.f32 0.0, %v271
      %v273 = vpop.f32.mrb[0].mxu0
      %v274 = vadd.f32 0.0, %v273
      %275 = vmatprep.mubr.f32.mxu0 0.0
      %276 = vmatmul.mubr.f32.gmra.mrb[0].mxu0 %v196
      %v277 = vpop.f32.mrb[0].mxu0
      %v278 = vadd.f32 0.0, %v277
      %v279 = vpop.f32.mrb[0].mxu0
      %v280 = vadd.f32 0.0, %v279
      %281 = vdwg.mxu0
      %282 = vmatprep.subr.mxu0 0.0
      %283 = vmatpush1.msra.mxu0 %v203
      %284 = vmatprep.subr.mxu0 0.0
      %285 = vmatpush1.msra.mxu0 0.0
      %286 = vmatprep.subr.mxu0 0.0
      %287 = vmatpush1.msra.mxu0 0.0
      %288 = vmatprep.subr.mxu0 0.0
      %289 = vmatpush1.msra.mxu0 0.0
      %290 = vmatprep.subr.mxu0 0.0
      %291 = vmatpush1.msra.mxu0 0.0
      %292 = vmatprep.subr.mxu0 0.0
      %293 = vmatpush1.msra.mxu0 0.0
      %294 = vmatprep.subr.mxu0 0.0
      %295 = vmatpush1.msra.mxu0 0.0
      %296 = vmatprep.subr.mxu0 0.0
      %297 = vmatpush1.msra.mxu0 0.0
      %298 = vmatprep.subr.mxu0 0.0
      %299 = vmatpush1.msra.mxu0 0.0
      %300 = vmatprep.subr.mxu0 0.0
      %301 = vmatpush1.msra.mxu0 0.0
      %302 = vmatprep.subr.mxu0 0.0
      %303 = vmatpush1.msra.mxu0 0.0
      %304 = vmatprep.subr.mxu0 0.0
      %305 = vmatpush1.msra.mxu0 0.0
      %306 = vmatprep.subr.mxu0 0.0
      %307 = vmatpush1.msra.mxu0 0.0
      %308 = vmatprep.subr.mxu0 0.0
      %309 = vmatpush1.msra.mxu0 0.0
      %310 = vmatprep.subr.mxu0 0.0
      %311 = vmatpush1.msra.mxu0 0.0
      %312 = vmatprep.subr.mxu0 0.0
      %313 = vmatpush1.msra.mxu0 0.0
      %314 = vmatprep.subr.mxu0 0.0
      %315 = vmatpush1.msra.mxu0 0.0
      %316 = vmatprep.subr.mxu0 0.0
      %317 = vmatpush1.msra.mxu0 0.0
      %318 = vmatprep.subr.mxu0 0.0
      %319 = vmatpush1.msra.mxu0 0.0
      %320 = vmatprep.subr.mxu0 0.0
      %321 = vmatpush1.msra.mxu0 0.0
      %322 = vmatprep.subr.mxu0 0.0
      %323 = vmatpush1.msra.mxu0 0.0
      %324 = vmatprep.subr.mxu0 0.0
      %325 = vmatpush1.msra.mxu0 0.0
      %326 = vmatprep.subr.mxu0 0.0
      %327 = vmatpush1.msra.mxu0 0.0
      %328 = vmatprep.subr.mxu0 0.0
      %329 = vmatpush1.msra.mxu0 0.0
      %330 = vmatprep.subr.mxu0 0.0
      %331 = vmatpush1.msra.mxu0 0.0
      %332 = vmatprep.subr.mxu0 0.0
      %333 = vmatpush1.msra.mxu0 0.0
      %334 = vmatprep.subr.mxu0 0.0
      %335 = vmatpush1.msra.mxu0 0.0
      %336 = vmatprep.subr.mxu0 0.0
      %337 = vmatpush1.msra.mxu0 0.0
      %338 = vmatprep.subr.mxu0 0.0
      %339 = vmatpush1.msra.mxu0 0.0
      %340 = vmatprep.subr.mxu0 0.0
      %341 = vmatpush1.msra.mxu0 0.0
      %342 = vmatprep.subr.mxu0 0.0
      %343 = vmatpush1.msra.mxu0 0.0
      %344 = vmatprep.subr.mxu0 0.0
      %345 = vmatpush1.msra.mxu0 0.0
      %346 = vmatprep.mubr.f32.mxu0 0.0
      %347 = vmatmul.mubr.f32.gmra.mrb[0].mxu0 %v193
      %v348 = vpop.f32.mrb[0].mxu0
      %v349 = vadd.f32 0.0, %v348
      %v350 = vpop.f32.mrb[0].mxu0
      %351 = vmatprep.mubr.f32.mxu0 0.0
      %352 = vmatmul.mubr.f32.gmra.mrb[0].mxu0 %v196
      %v353 = vpop.f32.mrb[0].mxu0
      %v354 = vadd.f32 0.0, %v353
      %v355 = vpop.f32.mrb[0].mxu0
      %356 = vdwg.mxu0
      %v358 = vsel %vm191, %v174, 0
      %v361 = vsel %vm191, %v175, 0
      %v363 = vsel %vm198, %v171, 0
      %v365 = vsel %vm198, %v172, 0
      %v367 = vsel %vm198, %v173, 0
      %369 = vmatprep.subr.mxu0 %v365
      %370 = vmatpush1.msra.mxu0 %v363
      %371 = vmatprep.subr.mxu0 0.0
      %372 = vmatpush1.msra.mxu0 0.0
      %373 = vmatprep.subr.mxu0 0.0
      %374 = vmatpush1.msra.mxu0 0.0
      %375 = vmatprep.subr.mxu0 0.0
      %376 = vmatpush1.msra.mxu0 0.0
      %377 = vmatprep.subr.mxu0 0.0
      %378 = vmatpush1.msra.mxu0 0.0
      %379 = vmatprep.subr.mxu0 0.0
      %380 = vmatpush1.msra.mxu0 0.0
      %381 = vmatprep.subr.mxu0 0.0
      %382 = vmatpush1.msra.mxu0 0.0
      %383 = vmatprep.subr.mxu0 0.0
      %384 = vmatpush1.msra.mxu0 0.0
      %385 = vmatprep.subr.mxu0 0.0
      %386 = vmatpush1.msra.mxu0 0.0
      %387 = vmatprep.subr.mxu0 0.0
      %388 = vmatpush1.msra.mxu0 0.0
      %389 = vmatprep.subr.mxu0 0.0
      %390 = vmatpush1.msra.mxu0 0.0
      %391 = vmatprep.subr.mxu0 0.0
      %392 = vmatpush1.msra.mxu0 0.0
      %393 = vmatprep.subr.mxu0 0.0
      %394 = vmatpush1.msra.mxu0 0.0
      %395 = vmatprep.subr.mxu0 0.0
      %396 = vmatpush1.msra.mxu0 0.0
      %397 = vmatprep.subr.mxu0 0.0
      %398 = vmatpush1.msra.mxu0 0.0
      %399 = vmatprep.subr.mxu0 0.0
      %400 = vmatpush1.msra.mxu0 0.0
      %401 = vmatprep.subr.mxu0 0.0
      %402 = vmatpush1.msra.mxu0 0.0
      %403 = vmatprep.subr.mxu0 0.0
      %404 = vmatpush1.msra.mxu0 0.0
      %405 = vmatprep.subr.mxu0 0.0
      %406 = vmatpush1.msra.mxu0 0.0
      %407 = vmatprep.subr.mxu0 0.0
      %408 = vmatpush1.msra.mxu0 0.0
      %409 = vmatprep.subr.mxu0 0.0
      %410 = vmatpush1.msra.mxu0 0.0
      %411 = vmatprep.subr.mxu0 0.0
      %412 = vmatpush1.msra.mxu0 0.0
      %413 = vmatprep.subr.mxu0 0.0
      %414 = vmatpush1.msra.mxu0 0.0
      %415 = vmatprep.subr.mxu0 0.0
      %416 = vmatpush1.msra.mxu0 0.0
      %417 = vmatprep.subr.mxu0 0.0
      %418 = vmatpush1.msra.mxu0 0.0
      %419 = vmatprep.subr.mxu0 0.0
      %420 = vmatpush1.msra.mxu0 0.0
      %421 = vmatprep.subr.mxu0 0.0
      %422 = vmatpush1.msra.mxu0 0.0
      %423 = vmatprep.subr.mxu0 0.0
      %424 = vmatpush1.msra.mxu0 0.0
      %425 = vmatprep.subr.mxu0 0.0
      %426 = vmatpush1.msra.mxu0 0.0
      %427 = vmatprep.subr.mxu0 0.0
      %428 = vmatpush1.msra.mxu0 0.0
      %429 = vmatprep.subr.mxu0 0.0
      %430 = vmatpush1.msra.mxu0 0.0
      %431 = vmatprep.subr.mxu0 0.0
      %432 = vmatpush1.msra.mxu0 0.0
      %433 = vmatprep.mubr.f32.mxu0 0.0
      %434 = vmatmul.mubr.f32.gmra.mrb[0].mxu0 %v358
      %v435 = vpop.f32.mrb[0].mxu0
      %v436 = vadd.f32 %v272, %v435
      %v437 = vpop.f32.mrb[0].mxu0
      %v438 = vadd.f32 %v274, %v437
      %439 = vmatprep.mubr.f32.mxu0 0.0
      %440 = vmatmul.mubr.f32.gmra.mrb[0].mxu0 %v361
      %v441 = vpop.f32.mrb[0].mxu0
      %v442 = vadd.f32 %v278, %v441
      %v443 = vpop.f32.mrb[0].mxu0
      %v444 = vadd.f32 %v280, %v443
      %445 = vdwg.mxu0
      %446 = vmatprep.subr.mxu0 0.0
      %447 = vmatpush1.msra.mxu0 %v367
      %448 = vmatprep.subr.mxu0 0.0
      %449 = vmatpush1.msra.mxu0 0.0
      %450 = vmatprep.subr.mxu0 0.0
      %451 = vmatpush1.msra.mxu0 0.0
      %452 = vmatprep.subr.mxu0 0.0
      %453 = vmatpush1.msra.mxu0 0.0
      %454 = vmatprep.subr.mxu0 0.0
      %455 = vmatpush1.msra.mxu0 0.0
      %456 = vmatprep.subr.mxu0 0.0
      %457 = vmatpush1.msra.mxu0 0.0
      %458 = vmatprep.subr.mxu0 0.0
      %459 = vmatpush1.msra.mxu0 0.0
      %460 = vmatprep.subr.mxu0 0.0
      %461 = vmatpush1.msra.mxu0 0.0
      %462 = vmatprep.subr.mxu0 0.0
      %463 = vmatpush1.msra.mxu0 0.0
      %464 = vmatprep.subr.mxu0 0.0
      %465 = vmatpush1.msra.mxu0 0.0
      %466 = vmatprep.subr.mxu0 0.0
      %467 = vmatpush1.msra.mxu0 0.0
      %468 = vmatprep.subr.mxu0 0.0
      %469 = vmatpush1.msra.mxu0 0.0
      %470 = vmatprep.subr.mxu0 0.0
      %471 = vmatpush1.msra.mxu0 0.0
      %472 = vmatprep.subr.mxu0 0.0
      %473 = vmatpush1.msra.mxu0 0.0
      %474 = vmatprep.subr.mxu0 0.0
      %475 = vmatpush1.msra.mxu0 0.0
      %476 = vmatprep.subr.mxu0 0.0
      %477 = vmatpush1.msra.mxu0 0.0
      %478 = vmatprep.subr.mxu0 0.0
      %479 = vmatpush1.msra.mxu0 0.0
      %480 = vmatprep.subr.mxu0 0.0
      %481 = vmatpush1.msra.mxu0 0.0
      %482 = vmatprep.subr.mxu0 0.0
      %483 = vmatpush1.msra.mxu0 0.0
      %484 = vmatprep.subr.mxu0 0.0
      %485 = vmatpush1.msra.mxu0 0.0
      %486 = vmatprep.subr.mxu0 0.0
      %487 = vmatpush1.msra.mxu0 0.0
      %488 = vmatprep.subr.mxu0 0.0
      %489 = vmatpush1.msra.mxu0 0.0
      %490 = vmatprep.subr.mxu0 0.0
      %491 = vmatpush1.msra.mxu0 0.0
      %492 = vmatprep.subr.mxu0 0.0
      %493 = vmatpush1.msra.mxu0 0.0
      %494 = vmatprep.subr.mxu0 0.0
      %495 = vmatpush1.msra.mxu0 0.0
      %496 = vmatprep.subr.mxu0 0.0
      %497 = vmatpush1.msra.mxu0 0.0
      %498 = vmatprep.subr.mxu0 0.0
      %499 = vmatpush1.msra.mxu0 0.0
      %500 = vmatprep.subr.mxu0 0.0
      %501 = vmatpush1.msra.mxu0 0.0
      %502 = vmatprep.subr.mxu0 0.0
      %503 = vmatpush1.msra.mxu0 0.0
      %504 = vmatprep.subr.mxu0 0.0
      %505 = vmatpush1.msra.mxu0 0.0
      %506 = vmatprep.subr.mxu0 0.0
      %507 = vmatpush1.msra.mxu0 0.0
      %508 = vmatprep.subr.mxu0 0.0
      %509 = vmatpush1.msra.mxu0 0.0
      %510 = vmatprep.mubr.f32.mxu0 0.0
      %511 = vmatmul.mubr.f32.gmra.mrb[0].mxu0 %v358
      %v512 = vpop.f32.mrb[0].mxu0
      %v513 = vadd.f32 %v349, %v512
      %v514 = vpop.f32.mrb[0].mxu0
      %515 = vmatprep.mubr.f32.mxu0 0.0
      %516 = vmatmul.mubr.f32.gmra.mrb[0].mxu0 %v361
      %v517 = vpop.f32.mrb[0].mxu0
      %v518 = vadd.f32 %v354, %v517
      %v519 = vpop.f32.mrb[0].mxu0
      %520 = vdwg.mxu0
      %s521 = scalar_lea.vmem %s1, 32
      %v522 = vld [vmem:[%s521] sm:$0xff]
      %v523 = vld [vmem:[%s521 + $0x8] sm:$0xff]
      %524 = vrot.lane.b32.xlu0 %v171, 126
      %v525 = vpop.permute.xlu0 %524
      %526 = vrot.lane.b32.xlu0 %v172, 126
      %v527 = vpop.permute.xlu0 %526
      %528 = vrot.lane.b32.xlu0 %v173, 126
      %v529 = vpop.permute.xlu0 %528
      %vm530 = vcmask 1031168
      %v531 = vsel %vm530, %v525, %v527
      %v532 = vsel %vm530, %v527, %v529
      %v534 = vsel %vm191, %v522, 0
      %v537 = vsel %vm191, %v523, 0
      %v539 = vsel %vm198, %v531, 0
      %v541 = vsel %vm198, %v532, 0
      %v543 = vsel %vm198, %v529, 0
      %545 = vmatprep.subr.mxu0 %v541
      %546 = vmatpush1.msra.mxu0 %v539
      %547 = vmatprep.subr.mxu0 0.0
      %548 = vmatpush1.msra.mxu0 0.0
      %549 = vmatprep.subr.mxu0 0.0
      %550 = vmatpush1.msra.mxu0 0.0
      %551 = vmatprep.subr.mxu0 0.0
      %552 = vmatpush1.msra.mxu0 0.0
      %553 = vmatprep.subr.mxu0 0.0
      %554 = vmatpush1.msra.mxu0 0.0
      %555 = vmatprep.subr.mxu0 0.0
      %556 = vmatpush1.msra.mxu0 0.0
      %557 = vmatprep.subr.mxu0 0.0
      %558 = vmatpush1.msra.mxu0 0.0
      %559 = vmatprep.subr.mxu0 0.0
      %560 = vmatpush1.msra.mxu0 0.0
      %561 = vmatprep.subr.mxu0 0.0
      %562 = vmatpush1.msra.mxu0 0.0
      %563 = vmatprep.subr.mxu0 0.0
      %564 = vmatpush1.msra.mxu0 0.0
      %565 = vmatprep.subr.mxu0 0.0
      %566 = vmatpush1.msra.mxu0 0.0
      %567 = vmatprep.subr.mxu0 0.0
      %568 = vmatpush1.msra.mxu0 0.0
      %569 = vmatprep.subr.mxu0 0.0
      %570 = vmatpush1.msra.mxu0 0.0
      %571 = vmatprep.subr.mxu0 0.0
      %572 = vmatpush1.msra.mxu0 0.0
      %573 = vmatprep.subr.mxu0 0.0
      %574 = vmatpush1.msra.mxu0 0.0
      %575 = vmatprep.subr.mxu0 0.0
      %576 = vmatpush1.msra.mxu0 0.0
      %577 = vmatprep.subr.mxu0 0.0
      %578 = vmatpush1.msra.mxu0 0.0
      %579 = vmatprep.subr.mxu0 0.0
      %580 = vmatpush1.msra.mxu0 0.0
      %581 = vmatprep.subr.mxu0 0.0
      %582 = vmatpush1.msra.mxu0 0.0
      %583 = vmatprep.subr.mxu0 0.0
      %584 = vmatpush1.msra.mxu0 0.0
      %585 = vmatprep.subr.mxu0 0.0
      %586 = vmatpush1.msra.mxu0 0.0
      %587 = vmatprep.subr.mxu0 0.0
      %588 = vmatpush1.msra.mxu0 0.0
      %589 = vmatprep.subr.mxu0 0.0
      %590 = vmatpush1.msra.mxu0 0.0
      %591 = vmatprep.subr.mxu0 0.0
      %592 = vmatpush1.msra.mxu0 0.0
      %593 = vmatprep.subr.mxu0 0.0
      %594 = vmatpush1.msra.mxu0 0.0
      %595 = vmatprep.subr.mxu0 0.0
      %596 = vmatpush1.msra.mxu0 0.0
      %597 = vmatprep.subr.mxu0 0.0
      %598 = vmatpush1.msra.mxu0 0.0
      %599 = vmatprep.subr.mxu0 0.0
      %600 = vmatpush1.msra.mxu0 0.0
      %601 = vmatprep.subr.mxu0 0.0
      %602 = vmatpush1.msra.mxu0 0.0
      %603 = vmatprep.subr.mxu0 0.0
      %604 = vmatpush1.msra.mxu0 0.0
      %605 = vmatprep.subr.mxu0 0.0
      %606 = vmatpush1.msra.mxu0 0.0
      %607 = vmatprep.subr.mxu0 0.0
      %608 = vmatpush1.msra.mxu0 0.0
      %609 = vmatprep.mubr.f32.mxu0 0.0
      %610 = vmatmul.mubr.f32.gmra.mrb[0].mxu0 %v534
      %v611 = vpop.f32.mrb[0].mxu0
      %v612 = vadd.f32 0.0, %v611
      %v613 = vpop.f32.mrb[0].mxu0
      %v614 = vadd.f32 0.0, %v613
      %615 = vmatprep.mubr.f32.mxu0 0.0
      %616 = vmatmul.mubr.f32.gmra.mrb[0].mxu0 %v537
      %v617 = vpop.f32.mrb[0].mxu0
      %v618 = vadd.f32 0.0, %v617
      %v619 = vpop.f32.mrb[0].mxu0
      %v620 = vadd.f32 0.0, %v619
      %621 = vdwg.mxu0
      %622 = vmatprep.subr.mxu0 0.0
      %623 = vmatpush1.msra.mxu0 %v543
      %624 = vmatprep.subr.mxu0 0.0
      %625 = vmatpush1.msra.mxu0 0.0
      %626 = vmatprep.subr.mxu0 0.0
      %627 = vmatpush1.msra.mxu0 0.0
      %628 = vmatprep.subr.mxu0 0.0
      %629 = vmatpush1.msra.mxu0 0.0
      %630 = vmatprep.subr.mxu0 0.0
      %631 = vmatpush1.msra.mxu0 0.0
      %632 = vmatprep.subr.mxu0 0.0
      %633 = vmatpush1.msra.mxu0 0.0
      %634 = vmatprep.subr.mxu0 0.0
      %635 = vmatpush1.msra.mxu0 0.0
      %636 = vmatprep.subr.mxu0 0.0
      %637 = vmatpush1.msra.mxu0 0.0
      %638 = vmatprep.subr.mxu0 0.0
      %639 = vmatpush1.msra.mxu0 0.0
      %640 = vmatprep.subr.mxu0 0.0
      %641 = vmatpush1.msra.mxu0 0.0
      %642 = vmatprep.subr.mxu0 0.0
      %643 = vmatpush1.msra.mxu0 0.0
      %644 = vmatprep.subr.mxu0 0.0
      %645 = vmatpush1.msra.mxu0 0.0
      %646 = vmatprep.subr.mxu0 0.0
      %647 = vmatpush1.msra.mxu0 0.0
      %648 = vmatprep.subr.mxu0 0.0
      %649 = vmatpush1.msra.mxu0 0.0
      %650 = vmatprep.subr.mxu0 0.0
      %651 = vmatpush1.msra.mxu0 0.0
      %652 = vmatprep.subr.mxu0 0.0
      %653 = vmatpush1.msra.mxu0 0.0
      %654 = vmatprep.subr.mxu0 0.0
      %655 = vmatpush1.msra.mxu0 0.0
      %656 = vmatprep.subr.mxu0 0.0
      %657 = vmatpush1.msra.mxu0 0.0
      %658 = vmatprep.subr.mxu0 0.0
      %659 = vmatpush1.msra.mxu0 0.0
      %660 = vmatprep.subr.mxu0 0.0
      %661 = vmatpush1.msra.mxu0 0.0
      %662 = vmatprep.subr.mxu0 0.0
      %663 = vmatpush1.msra.mxu0 0.0
      %664 = vmatprep.subr.mxu0 0.0
      %665 = vmatpush1.msra.mxu0 0.0
      %666 = vmatprep.subr.mxu0 0.0
      %667 = vmatpush1.msra.mxu0 0.0
      %668 = vmatprep.subr.mxu0 0.0
      %669 = vmatpush1.msra.mxu0 0.0
      %670 = vmatprep.subr.mxu0 0.0
      %671 = vmatpush1.msra.mxu0 0.0
      %672 = vmatprep.subr.mxu0 0.0
      %673 = vmatpush1.msra.mxu0 0.0
      %674 = vmatprep.subr.mxu0 0.0
      %675 = vmatpush1.msra.mxu0 0.0
      %676 = vmatprep.subr.mxu0 0.0
      %677 = vmatpush1.msra.mxu0 0.0
      %678 = vmatprep.subr.mxu0 0.0
      %679 = vmatpush1.msra.mxu0 0.0
      %680 = vmatprep.subr.mxu0 0.0
      %681 = vmatpush1.msra.mxu0 0.0
      %682 = vmatprep.subr.mxu0 0.0
      %683 = vmatpush1.msra.mxu0 0.0
      %684 = vmatprep.subr.mxu0 0.0
      %685 = vmatpush1.msra.mxu0 0.0
      %686 = vmatprep.mubr.f32.mxu0 0.0
      %687 = vmatmul.mubr.f32.gmra.mrb[0].mxu0 %v534
      %v688 = vpop.f32.mrb[0].mxu0
      %v689 = vadd.f32 0.0, %v688
      %v690 = vpop.f32.mrb[0].mxu0
      %691 = vmatprep.mubr.f32.mxu0 0.0
      %692 = vmatmul.mubr.f32.gmra.mrb[0].mxu0 %v537
      %v693 = vpop.f32.mrb[0].mxu0
      %v694 = vadd.f32 0.0, %v693
      %v695 = vpop.f32.mrb[0].mxu0
      %696 = vdwg.mxu0
      %v697 = vadd.f32 %v436, %v612
      %v698 = vadd.f32 %v438, %v614
      %v699 = vadd.f32 %v513, %v689
      %v700 = vadd.f32 %v442, %v618
      %v701 = vadd.f32 %v444, %v620
      %v702 = vadd.f32 %v518, %v694
      %s703 = scalar_lea.vmem %s1, 48
      %v704 = vld [vmem:[%s703] sm:$0xff]
      %v705 = vld [vmem:[%s703 + $0x8] sm:$0xff]
      %706 = vrot.lane.b32.xlu0 %v171, 110
      %v707 = vpop.permute.xlu0 %706
      %708 = vrot.lane.b32.xlu0 %v172, 110
      %v709 = vpop.permute.xlu0 %708
      %710 = vrot.lane.b32.xlu0 %v173, 110
      %v711 = vpop.permute.xlu0 %710
      %vm712 = vcmask 900096
      %v713 = vsel %vm712, %v707, %v709
      %v714 = vsel %vm712, %v709, %v711
      %v716 = vsel %vm191, %v704, 0
      %v719 = vsel %vm191, %v705, 0
      %v721 = vsel %vm198, %v713, 0
      %v723 = vsel %vm198, %v714, 0
      %v725 = vsel %vm198, %v711, 0
      %727 = vmatprep.subr.mxu0 %v723
      %728 = vmatpush1.msra.mxu0 %v721
      %729 = vmatprep.subr.mxu0 0.0
      %730 = vmatpush1.msra.mxu0 0.0
      %731 = vmatprep.subr.mxu0 0.0
      %732 = vmatpush1.msra.mxu0 0.0
      %733 = vmatprep.subr.mxu0 0.0
      %734 = vmatpush1.msra.mxu0 0.0
      %735 = vmatprep.subr.mxu0 0.0
      %736 = vmatpush1.msra.mxu0 0.0
      %737 = vmatprep.subr.mxu0 0.0
      %738 = vmatpush1.msra.mxu0 0.0
      %739 = vmatprep.subr.mxu0 0.0
      %740 = vmatpush1.msra.mxu0 0.0
      %741 = vmatprep.subr.mxu0 0.0
      %742 = vmatpush1.msra.mxu0 0.0
      %743 = vmatprep.subr.mxu0 0.0
      %744 = vmatpush1.msra.mxu0 0.0
      %745 = vmatprep.subr.mxu0 0.0
      %746 = vmatpush1.msra.mxu0 0.0
      %747 = vmatprep.subr.mxu0 0.0
      %748 = vmatpush1.msra.mxu0 0.0
      %749 = vmatprep.subr.mxu0 0.0
      %750 = vmatpush1.msra.mxu0 0.0
      %751 = vmatprep.subr.mxu0 0.0
      %752 = vmatpush1.msra.mxu0 0.0
      %753 = vmatprep.subr.mxu0 0.0
      %754 = vmatpush1.msra.mxu0 0.0
      %755 = vmatprep.subr.mxu0 0.0
      %756 = vmatpush1.msra.mxu0 0.0
      %757 = vmatprep.subr.mxu0 0.0
      %758 = vmatpush1.msra.mxu0 0.0
      %759 = vmatprep.subr.mxu0 0.0
      %760 = vmatpush1.msra.mxu0 0.0
      %761 = vmatprep.subr.mxu0 0.0
      %762 = vmatpush1.msra.mxu0 0.0
      %763 = vmatprep.subr.mxu0 0.0
      %764 = vmatpush1.msra.mxu0 0.0
      %765 = vmatprep.subr.mxu0 0.0
      %766 = vmatpush1.msra.mxu0 0.0
      %767 = vmatprep.subr.mxu0 0.0
      %768 = vmatpush1.msra.mxu0 0.0
      %769 = vmatprep.subr.mxu0 0.0
      %770 = vmatpush1.msra.mxu0 0.0
      %771 = vmatprep.subr.mxu0 0.0
      %772 = vmatpush1.msra.mxu0 0.0
      %773 = vmatprep.subr.mxu0 0.0
      %774 = vmatpush1.msra.mxu0 0.0
      %775 = vmatprep.subr.mxu0 0.0
      %776 = vmatpush1.msra.mxu0 0.0
      %777 = vmatprep.subr.mxu0 0.0
      %778 = vmatpush1.msra.mxu0 0.0
      %779 = vmatprep.subr.mxu0 0.0
      %780 = vmatpush1.msra.mxu0 0.0
      %781 = vmatprep.subr.mxu0 0.0
      %782 = vmatpush1.msra.mxu0 0.0
      %783 = vmatprep.subr.mxu0 0.0
      %784 = vmatpush1.msra.mxu0 0.0
      %785 = vmatprep.subr.mxu0 0.0
      %786 = vmatpush1.msra.mxu0 0.0
      %787 = vmatprep.subr.mxu0 0.0
      %788 = vmatpush1.msra.mxu0 0.0
      %789 = vmatprep.subr.mxu0 0.0
      %790 = vmatpush1.msra.mxu0 0.0
      %791 = vmatprep.mubr.f32.mxu0 0.0
      %792 = vmatmul.mubr.f32.gmra.mrb[0].mxu0 %v716
      %v793 = vpop.f32.mrb[0].mxu0
      %v794 = vadd.f32 0.0, %v793
      %v795 = vpop.f32.mrb[0].mxu0
      %v796 = vadd.f32 0.0, %v795
      %797 = vmatprep.mubr.f32.mxu0 0.0
      %798 = vmatmul.mubr.f32.gmra.mrb[0].mxu0 %v719
      %v799 = vpop.f32.mrb[0].mxu0
      %v800 = vadd.f32 0.0, %v799
      %v801 = vpop.f32.mrb[0].mxu0
      %v802 = vadd.f32 0.0, %v801
      %803 = vdwg.mxu0
      %804 = vmatprep.subr.mxu0 0.0
      %805 = vmatpush1.msra.mxu0 %v725
      %806 = vmatprep.subr.mxu0 0.0
      %807 = vmatpush1.msra.mxu0 0.0
      %808 = vmatprep.subr.mxu0 0.0
      %809 = vmatpush1.msra.mxu0 0.0
      %810 = vmatprep.subr.mxu0 0.0
      %811 = vmatpush1.msra.mxu0 0.0
      %812 = vmatprep.subr.mxu0 0.0
      %813 = vmatpush1.msra.mxu0 0.0
      %814 = vmatprep.subr.mxu0 0.0
      %815 = vmatpush1.msra.mxu0 0.0
      %816 = vmatprep.subr.mxu0 0.0
      %817 = vmatpush1.msra.mxu0 0.0
      %818 = vmatprep.subr.mxu0 0.0
      %819 = vmatpush1.msra.mxu0 0.0
      %820 = vmatprep.subr.mxu0 0.0
      %821 = vmatpush1.msra.mxu0 0.0
      %822 = vmatprep.subr.mxu0 0.0
      %823 = vmatpush1.msra.mxu0 0.0
      %824 = vmatprep.subr.mxu0 0.0
      %825 = vmatpush1.msra.mxu0 0.0
      %826 = vmatprep.subr.mxu0 0.0
      %827 = vmatpush1.msra.mxu0 0.0
      %828 = vmatprep.subr.mxu0 0.0
      %829 = vmatpush1.msra.mxu0 0.0
      %830 = vmatprep.subr.mxu0 0.0
      %831 = vmatpush1.msra.mxu0 0.0
      %832 = vmatprep.subr.mxu0 0.0
      %833 = vmatpush1.msra.mxu0 0.0
      %834 = vmatprep.subr.mxu0 0.0
      %835 = vmatpush1.msra.mxu0 0.0
      %836 = vmatprep.subr.mxu0 0.0
      %837 = vmatpush1.msra.mxu0 0.0
      %838 = vmatprep.subr.mxu0 0.0
      %839 = vmatpush1.msra.mxu0 0.0
      %840 = vmatprep.subr.mxu0 0.0
      %841 = vmatpush1.msra.mxu0 0.0
      %842 = vmatprep.subr.mxu0 0.0
      %843 = vmatpush1.msra.mxu0 0.0
      %844 = vmatprep.subr.mxu0 0.0
      %845 = vmatpush1.msra.mxu0 0.0
      %846 = vmatprep.subr.mxu0 0.0
      %847 = vmatpush1.msra.mxu0 0.0
      %848 = vmatprep.subr.mxu0 0.0
      %849 = vmatpush1.msra.mxu0 0.0
      %850 = vmatprep.subr.mxu0 0.0
      %851 = vmatpush1.msra.mxu0 0.0
      %852 = vmatprep.subr.mxu0 0.0
      %853 = vmatpush1.msra.mxu0 0.0
      %854 = vmatprep.subr.mxu0 0.0
      %855 = vmatpush1.msra.mxu0 0.0
      %856 = vmatprep.subr.mxu0 0.0
      %857 = vmatpush1.msra.mxu0 0.0
      %858 = vmatprep.subr.mxu0 0.0
      %859 = vmatpush1.msra.mxu0 0.0
      %860 = vmatprep.subr.mxu0 0.0
      %861 = vmatpush1.msra.mxu0 0.0
      %862 = vmatprep.subr.mxu0 0.0
      %863 = vmatpush1.msra.mxu0 0.0
      %864 = vmatprep.subr.mxu0 0.0
      %865 = vmatpush1.msra.mxu0 0.0
      %866 = vmatprep.subr.mxu0 0.0
      %867 = vmatpush1.msra.mxu0 0.0
      %868 = vmatprep.mubr.f32.mxu0 0.0
      %869 = vmatmul.mubr.f32.gmra.mrb[0].mxu0 %v716
      %v870 = vpop.f32.mrb[0].mxu0
      %v871 = vadd.f32 0.0, %v870
      %v872 = vpop.f32.mrb[0].mxu0
      %873 = vmatprep.mubr.f32.mxu0 0.0
      %874 = vmatmul.mubr.f32.gmra.mrb[0].mxu0 %v719
      %v875 = vpop.f32.mrb[0].mxu0
      %v876 = vadd.f32 0.0, %v875
      %v877 = vpop.f32.mrb[0].mxu0
      %878 = vdwg.mxu0
      %v879 = vadd.f32 %v697, %v794
      %v880 = vadd.f32 %v698, %v796
      %v881 = vadd.f32 %v699, %v871
      %v882 = vadd.f32 %v700, %v800
      %v883 = vadd.f32 %v701, %v802
      %v884 = vadd.f32 %v702, %v876
      %s885 = scalar_lea.vmem %s1, 64
      %v886 = vld [vmem:[%s885] sm:$0xff]
      %v887 = vld [vmem:[%s885 + $0x8] sm:$0xff]
      %888 = vrot.lane.b32.xlu0 %v171, 109
      %v889 = vpop.permute.xlu0 %888
      %890 = vrot.lane.b32.xlu0 %v172, 109
      %v891 = vpop.permute.xlu0 %890
      %892 = vrot.lane.b32.xlu0 %v173, 109
      %v893 = vpop.permute.xlu0 %892
      %vm894 = vcmask 891904
      %v895 = vsel %vm894, %v889, %v891
      %v896 = vsel %vm894, %v891, %v893
      %v898 = vsel %vm191, %v886, 0
      %v901 = vsel %vm191, %v887, 0
      %v903 = vsel %vm198, %v895, 0
      %v905 = vsel %vm198, %v896, 0
      %v907 = vsel %vm198, %v893, 0
      %909 = vmatprep.subr.mxu0 %v905
      %910 = vmatpush1.msra.mxu0 %v903
      %911 = vmatprep.subr.mxu0 0.0
      %912 = vmatpush1.msra.mxu0 0.0
      %913 = vmatprep.subr.mxu0 0.0
      %914 = vmatpush1.msra.mxu0 0.0
      %915 = vmatprep.subr.mxu0 0.0
      %916 = vmatpush1.msra.mxu0 0.0
      %917 = vmatprep.subr.mxu0 0.0
      %918 = vmatpush1.msra.mxu0 0.0
      %919 = vmatprep.subr.mxu0 0.0
      %920 = vmatpush1.msra.mxu0 0.0
      %921 = vmatprep.subr.mxu0 0.0
      %922 = vmatpush1.msra.mxu0 0.0
      %923 = vmatprep.subr.mxu0 0.0
      %924 = vmatpush1.msra.mxu0 0.0
      %925 = vmatprep.subr.mxu0 0.0
      %926 = vmatpush1.msra.mxu0 0.0
      %927 = vmatprep.subr.mxu0 0.0
      %928 = vmatpush1.msra.mxu0 0.0
      %929 = vmatprep.subr.mxu0 0.0
      %930 = vmatpush1.msra.mxu0 0.0
      %931 = vmatprep.subr.mxu0 0.0
      %932 = vmatpush1.msra.mxu0 0.0
      %933 = vmatprep.subr.mxu0 0.0
      %934 = vmatpush1.msra.mxu0 0.0
      %935 = vmatprep.subr.mxu0 0.0
      %936 = vmatpush1.msra.mxu0 0.0
      %937 = vmatprep.subr.mxu0 0.0
      %938 = vmatpush1.msra.mxu0 0.0
      %939 = vmatprep.subr.mxu0 0.0
      %940 = vmatpush1.msra.mxu0 0.0
      %941 = vmatprep.subr.mxu0 0.0
      %942 = vmatpush1.msra.mxu0 0.0
      %943 = vmatprep.subr.mxu0 0.0
      %944 = vmatpush1.msra.mxu0 0.0
      %945 = vmatprep.subr.mxu0 0.0
      %946 = vmatpush1.msra.mxu0 0.0
      %947 = vmatprep.subr.mxu0 0.0
      %948 = vmatpush1.msra.mxu0 0.0
      %949 = vmatprep.subr.mxu0 0.0
      %950 = vmatpush1.msra.mxu0 0.0
      %951 = vmatprep.subr.mxu0 0.0
      %952 = vmatpush1.msra.mxu0 0.0
      %953 = vmatprep.subr.mxu0 0.0
      %954 = vmatpush1.msra.mxu0 0.0
      %955 = vmatprep.subr.mxu0 0.0
      %956 = vmatpush1.msra.mxu0 0.0
      %957 = vmatprep.subr.mxu0 0.0
      %958 = vmatpush1.msra.mxu0 0.0
      %959 = vmatprep.subr.mxu0 0.0
      %960 = vmatpush1.msra.mxu0 0.0
      %961 = vmatprep.subr.mxu0 0.0
      %962 = vmatpush1.msra.mxu0 0.0
      %963 = vmatprep.subr.mxu0 0.0
      %964 = vmatpush1.msra.mxu0 0.0
      %965 = vmatprep.subr.mxu0 0.0
      %966 = vmatpush1.msra.mxu0 0.0
      %967 = vmatprep.subr.mxu0 0.0
      %968 = vmatpush1.msra.mxu0 0.0
      %969 = vmatprep.subr.mxu0 0.0
      %970 = vmatpush1.msra.mxu0 0.0
      %971 = vmatprep.subr.mxu0 0.0
      %972 = vmatpush1.msra.mxu0 0.0
      %973 = vmatprep.mubr.f32.mxu0 0.0
      %974 = vmatmul.mubr.f32.gmra.mrb[0].mxu0 %v898
      %v975 = vpop.f32.mrb[0].mxu0
      %v976 = vadd.f32 0.0, %v975
      %v977 = vpop.f32.mrb[0].mxu0
      %v978 = vadd.f32 0.0, %v977
      %979 = vmatprep.mubr.f32.mxu0 0.0
      %980 = vmatmul.mubr.f32.gmra.mrb[0].mxu0 %v901
      %v981 = vpop.f32.mrb[0].mxu0
      %v982 = vadd.f32 0.0, %v981
      %v983 = vpop.f32.mrb[0].mxu0
      %v984 = vadd.f32 0.0, %v983
      %985 = vdwg.mxu0
      %986 = vmatprep.subr.mxu0 0.0
      %987 = vmatpush1.msra.mxu0 %v907
      %988 = vmatprep.subr.mxu0 0.0
      %989 = vmatpush1.msra.mxu0 0.0
      %990 = vmatprep.subr.mxu0 0.0
      %991 = vmatpush1.msra.mxu0 0.0
      %992 = vmatprep.subr.mxu0 0.0
      %993 = vmatpush1.msra.mxu0 0.0
      %994 = vmatprep.subr.mxu0 0.0
      %995 = vmatpush1.msra.mxu0 0.0
      %996 = vmatprep.subr.mxu0 0.0
      %997 = vmatpush1.msra.mxu0 0.0
      %998 = vmatprep.subr.mxu0 0.0
      %999 = vmatpush1.msra.mxu0 0.0
      %1000 = vmatprep.subr.mxu0 0.0
      %1001 = vmatpush1.msra.mxu0 0.0
      %1002 = vmatprep.subr.mxu0 0.0
      %1003 = vmatpush1.msra.mxu0 0.0
      %1004 = vmatprep.subr.mxu0 0.0
      %1005 = vmatpush1.msra.mxu0 0.0
      %1006 = vmatprep.subr.mxu0 0.0
      %1007 = vmatpush1.msra.mxu0 0.0
      %1008 = vmatprep.subr.mxu0 0.0
      %1009 = vmatpush1.msra.mxu0 0.0
      %1010 = vmatprep.subr.mxu0 0.0
      %1011 = vmatpush1.msra.mxu0 0.0
      %1012 = vmatprep.subr.mxu0 0.0
      %1013 = vmatpush1.msra.mxu0 0.0
      %1014 = vmatprep.subr.mxu0 0.0
      %1015 = vmatpush1.msra.mxu0 0.0
      %1016 = vmatprep.subr.mxu0 0.0
      %1017 = vmatpush1.msra.mxu0 0.0
      %1018 = vmatprep.subr.mxu0 0.0
      %1019 = vmatpush1.msra.mxu0 0.0
      %1020 = vmatprep.subr.mxu0 0.0
      %1021 = vmatpush1.msra.mxu0 0.0
      %1022 = vmatprep.subr.mxu0 0.0
      %1023 = vmatpush1.msra.mxu0 0.0
      %1024 = vmatprep.subr.mxu0 0.0
      %1025 = vmatpush1.msra.mxu0 0.0
      %1026 = vmatprep.subr.mxu0 0.0
      %1027 = vmatpush1.msra.mxu0 0.0
      %1028 = vmatprep.subr.mxu0 0.0
      %1029 = vmatpush1.msra.mxu0 0.0
      %1030 = vmatprep.subr.mxu0 0.0
      %1031 = vmatpush1.msra.mxu0 0.0
      %1032 = vmatprep.subr.mxu0 0.0
      %1033 = vmatpush1.msra.mxu0 0.0
      %1034 = vmatprep.subr.mxu0 0.0
      %1035 = vmatpush1.msra.mxu0 0.0
      %1036 = vmatprep.subr.mxu0 0.0
      %1037 = vmatpush1.msra.mxu0 0.0
      %1038 = vmatprep.subr.mxu0 0.0
      %1039 = vmatpush1.msra.mxu0 0.0
      %1040 = vmatprep.subr.mxu0 0.0
      %1041 = vmatpush1.msra.mxu0 0.0
      %1042 = vmatprep.subr.mxu0 0.0
      %1043 = vmatpush1.msra.mxu0 0.0
      %1044 = vmatprep.subr.mxu0 0.0
      %1045 = vmatpush1.msra.mxu0 0.0
      %1046 = vmatprep.subr.mxu0 0.0
      %1047 = vmatpush1.msra.mxu0 0.0
      %1048 = vmatprep.subr.mxu0 0.0
      %1049 = vmatpush1.msra.mxu0 0.0
      %1050 = vmatprep.mubr.f32.mxu0 0.0
      %1051 = vmatmul.mubr.f32.gmra.mrb[0].mxu0 %v898
      %v1052 = vpop.f32.mrb[0].mxu0
      %v1053 = vadd.f32 0.0, %v1052
      %v1054 = vpop.f32.mrb[0].mxu0
      %1055 = vmatprep.mubr.f32.mxu0 0.0
      %1056 = vmatmul.mubr.f32.gmra.mrb[0].mxu0 %v901
      %v1057 = vpop.f32.mrb[0].mxu0
      %v1058 = vadd.f32 0.0, %v1057
      %v1059 = vpop.f32.mrb[0].mxu0
      %1060 = vdwg.mxu0
      %v1061 = vadd.f32 %v879, %v976
      %v1062 = vadd.f32 %v880, %v978
      %v1063 = vadd.f32 %v881, %v1053
      %v1064 = vadd.f32 %v882, %v982
      %v1065 = vadd.f32 %v883, %v984
      %v1066 = vadd.f32 %v884, %v1058
      %s1067 = scalar_lea.vmem %s1, 80
      %v1068 = vld [vmem:[%s1067] sm:$0xff]
      %v1069 = vld [vmem:[%s1067 + $0x8] sm:$0xff]
      %1070 = vrot.lane.b32.xlu0 %v171, 108
      %v1071 = vpop.permute.xlu0 %1070
      %1072 = vrot.lane.b32.xlu0 %v172, 108
      %v1073 = vpop.permute.xlu0 %1072
      %1074 = vrot.lane.b32.xlu0 %v173, 108
      %v1075 = vpop.permute.xlu0 %1074
      %vm1076 = vcmask 883712
      %v1077 = vsel %vm1076, %v1071, %v1073
      %v1078 = vsel %vm1076, %v1073, %v1075
      %v1080 = vsel %vm191, %v1068, 0
      %v1083 = vsel %vm191, %v1069, 0
      %v1085 = vsel %vm198, %v1077, 0
      %v1087 = vsel %vm198, %v1078, 0
      %v1089 = vsel %vm198, %v1075, 0
      %1091 = vmatprep.subr.mxu0 %v1087
      %1092 = vmatpush1.msra.mxu0 %v1085
      %1093 = vmatprep.subr.mxu0 0.0
      %1094 = vmatpush1.msra.mxu0 0.0
      %1095 = vmatprep.subr.mxu0 0.0
      %1096 = vmatpush1.msra.mxu0 0.0
      %1097 = vmatprep.subr.mxu0 0.0
      %1098 = vmatpush1.msra.mxu0 0.0
      %1099 = vmatprep.subr.mxu0 0.0
      %1100 = vmatpush1.msra.mxu0 0.0
      %1101 = vmatprep.subr.mxu0 0.0
      %1102 = vmatpush1.msra.mxu0 0.0
      %1103 = vmatprep.subr.mxu0 0.0
      %1104 = vmatpush1.msra.mxu0 0.0
      %1105 = vmatprep.subr.mxu0 0.0
      %1106 = vmatpush1.msra.mxu0 0.0
      %1107 = vmatprep.subr.mxu0 0.0
      %1108 = vmatpush1.msra.mxu0 0.0
      %1109 = vmatprep.subr.mxu0 0.0
      %1110 = vmatpush1.msra.mxu0 0.0
      %1111 = vmatprep.subr.mxu0 0.0
      %1112 = vmatpush1.msra.mxu0 0.0
      %1113 = vmatprep.subr.mxu0 0.0
      %1114 = vmatpush1.msra.mxu0 0.0
      %1115 = vmatprep.subr.mxu0 0.0
      %1116 = vmatpush1.msra.mxu0 0.0
      %1117 = vmatprep.subr.mxu0 0.0
      %1118 = vmatpush1.msra.mxu0 0.0
      %1119 = vmatprep.subr.mxu0 0.0
      %1120 = vmatpush1.msra.mxu0 0.0
      %1121 = vmatprep.subr.mxu0 0.0
      %1122 = vmatpush1.msra.mxu0 0.0
      %1123 = vmatprep.subr.mxu0 0.0
      %1124 = vmatpush1.msra.mxu0 0.0
      %1125 = vmatprep.subr.mxu0 0.0
      %1126 = vmatpush1.msra.mxu0 0.0
      %1127 = vmatprep.subr.mxu0 0.0
      %1128 = vmatpush1.msra.mxu0 0.0
      %1129 = vmatprep.subr.mxu0 0.0
      %1130 = vmatpush1.msra.mxu0 0.0
      %1131 = vmatprep.subr.mxu0 0.0
      %1132 = vmatpush1.msra.mxu0 0.0
      %1133 = vmatprep.subr.mxu0 0.0
      %1134 = vmatpush1.msra.mxu0 0.0
      %1135 = vmatprep.subr.mxu0 0.0
      %1136 = vmatpush1.msra.mxu0 0.0
      %1137 = vmatprep.subr.mxu0 0.0
      %1138 = vmatpush1.msra.mxu0 0.0
      %1139 = vmatprep.subr.mxu0 0.0
      %1140 = vmatpush1.msra.mxu0 0.0
      %1141 = vmatprep.subr.mxu0 0.0
      %1142 = vmatpush1.msra.mxu0 0.0
      %1143 = vmatprep.subr.mxu0 0.0
      %1144 = vmatpush1.msra.mxu0 0.0
      %1145 = vmatprep.subr.mxu0 0.0
      %1146 = vmatpush1.msra.mxu0 0.0
      %1147 = vmatprep.subr.mxu0 0.0
      %1148 = vmatpush1.msra.mxu0 0.0
      %1149 = vmatprep.subr.mxu0 0.0
      %1150 = vmatpush1.msra.mxu0 0.0
      %1151 = vmatprep.subr.mxu0 0.0
      %1152 = vmatpush1.msra.mxu0 0.0
      %1153 = vmatprep.subr.mxu0 0.0
      %1154 = vmatpush1.msra.mxu0 0.0
      %1155 = vmatprep.mubr.f32.mxu0 0.0
      %1156 = vmatmul.mubr.f32.gmra.mrb[0].mxu0 %v1080
      %v1157 = vpop.f32.mrb[0].mxu0
      %v1158 = vadd.f32 0.0, %v1157
      %v1159 = vpop.f32.mrb[0].mxu0
      %v1160 = vadd.f32 0.0, %v1159
      %1161 = vmatprep.mubr.f32.mxu0 0.0
      %1162 = vmatmul.mubr.f32.gmra.mrb[0].mxu0 %v1083
      %v1163 = vpop.f32.mrb[0].mxu0
      %v1164 = vadd.f32 0.0, %v1163
      %v1165 = vpop.f32.mrb[0].mxu0
      %v1166 = vadd.f32 0.0, %v1165
      %1167 = vdwg.mxu0
      %1168 = vmatprep.subr.mxu0 0.0
      %1169 = vmatpush1.msra.mxu0 %v1089
      %1170 = vmatprep.subr.mxu0 0.0
      %1171 = vmatpush1.msra.mxu0 0.0
      %1172 = vmatprep.subr.mxu0 0.0
      %1173 = vmatpush1.msra.mxu0 0.0
      %1174 = vmatprep.subr.mxu0 0.0
      %1175 = vmatpush1.msra.mxu0 0.0
      %1176 = vmatprep.subr.mxu0 0.0
      %1177 = vmatpush1.msra.mxu0 0.0
      %1178 = vmatprep.subr.mxu0 0.0
      %1179 = vmatpush1.msra.mxu0 0.0
      %1180 = vmatprep.subr.mxu0 0.0
      %1181 = vmatpush1.msra.mxu0 0.0
      %1182 = vmatprep.subr.mxu0 0.0
      %1183 = vmatpush1.msra.mxu0 0.0
      %1184 = vmatprep.subr.mxu0 0.0
      %1185 = vmatpush1.msra.mxu0 0.0
      %1186 = vmatprep.subr.mxu0 0.0
      %1187 = vmatpush1.msra.mxu0 0.0
      %1188 = vmatprep.subr.mxu0 0.0
      %1189 = vmatpush1.msra.mxu0 0.0
      %1190 = vmatprep.subr.mxu0 0.0
      %1191 = vmatpush1.msra.mxu0 0.0
      %1192 = vmatprep.subr.mxu0 0.0
      %1193 = vmatpush1.msra.mxu0 0.0
      %1194 = vmatprep.subr.mxu0 0.0
      %1195 = vmatpush1.msra.mxu0 0.0
      %1196 = vmatprep.subr.mxu0 0.0
      %1197 = vmatpush1.msra.mxu0 0.0
      %1198 = vmatprep.subr.mxu0 0.0
      %1199 = vmatpush1.msra.mxu0 0.0
      %1200 = vmatprep.subr.mxu0 0.0
      %1201 = vmatpush1.msra.mxu0 0.0
      %1202 = vmatprep.subr.mxu0 0.0
      %1203 = vmatpush1.msra.mxu0 0.0
      %1204 = vmatprep.subr.mxu0 0.0
      %1205 = vmatpush1.msra.mxu0 0.0
      %1206 = vmatprep.subr.mxu0 0.0
      %1207 = vmatpush1.msra.mxu0 0.0
      %1208 = vmatprep.subr.mxu0 0.0
      %1209 = vmatpush1.msra.mxu0 0.0
      %1210 = vmatprep.subr.mxu0 0.0
      %1211 = vmatpush1.msra.mxu0 0.0
      %1212 = vmatprep.subr.mxu0 0.0
      %1213 = vmatpush1.msra.mxu0 0.0
      %1214 = vmatprep.subr.mxu0 0.0
      %1215 = vmatpush1.msra.mxu0 0.0
      %1216 = vmatprep.subr.mxu0 0.0
      %1217 = vmatpush1.msra.mxu0 0.0
      %1218 = vmatprep.subr.mxu0 0.0
      %1219 = vmatpush1.msra.mxu0 0.0
      %1220 = vmatprep.subr.mxu0 0.0
      %1221 = vmatpush1.msra.mxu0 0.0
      %1222 = vmatprep.subr.mxu0 0.0
      %1223 = vmatpush1.msra.mxu0 0.0
      %1224 = vmatprep.subr.mxu0 0.0
      %1225 = vmatpush1.msra.mxu0 0.0
      %1226 = vmatprep.subr.mxu0 0.0
      %1227 = vmatpush1.msra.mxu0 0.0
      %1228 = vmatprep.subr.mxu0 0.0
      %1229 = vmatpush1.msra.mxu0 0.0
      %1230 = vmatprep.subr.mxu0 0.0
      %1231 = vmatpush1.msra.mxu0 0.0
      %1232 = vmatprep.mubr.f32.mxu0 0.0
      %1233 = vmatmul.mubr.f32.gmra.mrb[0].mxu0 %v1080
      %v1234 = vpop.f32.mrb[0].mxu0
      %v1235 = vadd.f32 0.0, %v1234
      %v1236 = vpop.f32.mrb[0].mxu0
      %1237 = vmatprep.mubr.f32.mxu0 0.0
      %1238 = vmatmul.mubr.f32.gmra.mrb[0].mxu0 %v1083
      %v1239 = vpop.f32.mrb[0].mxu0
      %v1240 = vadd.f32 0.0, %v1239
      %v1241 = vpop.f32.mrb[0].mxu0
      %1242 = vdwg.mxu0
      %v1243 = vadd.f32 %v1061, %v1158
      %v1244 = vadd.f32 %v1062, %v1160
      %v1245 = vadd.f32 %v1063, %v1235
      %v1246 = vadd.f32 %v1064, %v1164
      %v1247 = vadd.f32 %v1065, %v1166
      %v1248 = vadd.f32 %v1066, %v1240
      %s1249 = scalar_lea.vmem %s1, 96
      %v1250 = vld [vmem:[%s1249] sm:$0xff]
      %v1251 = vld [vmem:[%s1249 + $0x8] sm:$0xff]
      %1252 = vrot.lane.b32.xlu0 %v171, 92
      %v1253 = vpop.permute.xlu0 %1252
      %1254 = vrot.lane.b32.xlu0 %v172, 92
      %v1255 = vpop.permute.xlu0 %1254
      %1256 = vrot.lane.b32.xlu0 %v173, 92
      %v1257 = vpop.permute.xlu0 %1256
      %vm1258 = vcmask 752640
      %v1259 = vsel %vm1258, %v1253, %v1255
      %v1260 = vsel %vm1258, %v1255, %v1257
      %v1262 = vsel %vm191, %v1250, 0
      %v1265 = vsel %vm191, %v1251, 0
      %v1267 = vsel %vm198, %v1259, 0
      %v1269 = vsel %vm198, %v1260, 0
      %v1271 = vsel %vm198, %v1257, 0
      %1273 = vmatprep.subr.mxu0 %v1269
      %1274 = vmatpush1.msra.mxu0 %v1267
      %1275 = vmatprep.subr.mxu0 0.0
      %1276 = vmatpush1.msra.mxu0 0.0
      %1277 = vmatprep.subr.mxu0 0.0
      %1278 = vmatpush1.msra.mxu0 0.0
      %1279 = vmatprep.subr.mxu0 0.0
      %1280 = vmatpush1.msra.mxu0 0.0
      %1281 = vmatprep.subr.mxu0 0.0
      %1282 = vmatpush1.msra.mxu0 0.0
      %1283 = vmatprep.subr.mxu0 0.0
      %1284 = vmatpush1.msra.mxu0 0.0
      %1285 = vmatprep.subr.mxu0 0.0
      %1286 = vmatpush1.msra.mxu0 0.0
      %1287 = vmatprep.subr.mxu0 0.0
      %1288 = vmatpush1.msra.mxu0 0.0
      %1289 = vmatprep.subr.mxu0 0.0
      %1290 = vmatpush1.msra.mxu0 0.0
      %1291 = vmatprep.subr.mxu0 0.0
      %1292 = vmatpush1.msra.mxu0 0.0
      %1293 = vmatprep.subr.mxu0 0.0
      %1294 = vmatpush1.msra.mxu0 0.0
      %1295 = vmatprep.subr.mxu0 0.0
      %1296 = vmatpush1.msra.mxu0 0.0
      %1297 = vmatprep.subr.mxu0 0.0
      %1298 = vmatpush1.msra.mxu0 0.0
      %1299 = vmatprep.subr.mxu0 0.0
      %1300 = vmatpush1.msra.mxu0 0.0
      %1301 = vmatprep.subr.mxu0 0.0
      %1302 = vmatpush1.msra.mxu0 0.0
      %1303 = vmatprep.subr.mxu0 0.0
      %1304 = vmatpush1.msra.mxu0 0.0
      %1305 = vmatprep.subr.mxu0 0.0
      %1306 = vmatpush1.msra.mxu0 0.0
      %1307 = vmatprep.subr.mxu0 0.0
      %1308 = vmatpush1.msra.mxu0 0.0
      %1309 = vmatprep.subr.mxu0 0.0
      %1310 = vmatpush1.msra.mxu0 0.0
      %1311 = vmatprep.subr.mxu0 0.0
      %1312 = vmatpush1.msra.mxu0 0.0
      %1313 = vmatprep.subr.mxu0 0.0
      %1314 = vmatpush1.msra.mxu0 0.0
      %1315 = vmatprep.subr.mxu0 0.0
      %1316 = vmatpush1.msra.mxu0 0.0
      %1317 = vmatprep.subr.mxu0 0.0
      %1318 = vmatpush1.msra.mxu0 0.0
      %1319 = vmatprep.subr.mxu0 0.0
      %1320 = vmatpush1.msra.mxu0 0.0
      %1321 = vmatprep.subr.mxu0 0.0
      %1322 = vmatpush1.msra.mxu0 0.0
      %1323 = vmatprep.subr.mxu0 0.0
      %1324 = vmatpush1.msra.mxu0 0.0
      %1325 = vmatprep.subr.mxu0 0.0
      %1326 = vmatpush1.msra.mxu0 0.0
      %1327 = vmatprep.subr.mxu0 0.0
      %1328 = vmatpush1.msra.mxu0 0.0
      %1329 = vmatprep.subr.mxu0 0.0
      %1330 = vmatpush1.msra.mxu0 0.0
      %1331 = vmatprep.subr.mxu0 0.0
      %1332 = vmatpush1.msra.mxu0 0.0
      %1333 = vmatprep.subr.mxu0 0.0
      %1334 = vmatpush1.msra.mxu0 0.0
      %1335 = vmatprep.subr.mxu0 0.0
      %1336 = vmatpush1.msra.mxu0 0.0
      %1337 = vmatprep.mubr.f32.mxu0 0.0
      %1338 = vmatmul.mubr.f32.gmra.mrb[0].mxu0 %v1262
      %v1339 = vpop.f32.mrb[0].mxu0
      %v1340 = vadd.f32 0.0, %v1339
      %v1341 = vpop.f32.mrb[0].mxu0
      %v1342 = vadd.f32 0.0, %v1341
      %1343 = vmatprep.mubr.f32.mxu0 0.0
      %1344 = vmatmul.mubr.f32.gmra.mrb[0].mxu0 %v1265
      %v1345 = vpop.f32.mrb[0].mxu0
      %v1346 = vadd.f32 0.0, %v1345
      %v1347 = vpop.f32.mrb[0].mxu0
      %v1348 = vadd.f32 0.0, %v1347
      %1349 = vdwg.mxu0
      %1350 = vmatprep.subr.mxu0 0.0
      %1351 = vmatpush1.msra.mxu0 %v1271
      %1352 = vmatprep.subr.mxu0 0.0
      %1353 = vmatpush1.msra.mxu0 0.0
      %1354 = vmatprep.subr.mxu0 0.0
      %1355 = vmatpush1.msra.mxu0 0.0
      %1356 = vmatprep.subr.mxu0 0.0
      %1357 = vmatpush1.msra.mxu0 0.0
      %1358 = vmatprep.subr.mxu0 0.0
      %1359 = vmatpush1.msra.mxu0 0.0
      %1360 = vmatprep.subr.mxu0 0.0
      %1361 = vmatpush1.msra.mxu0 0.0
      %1362 = vmatprep.subr.mxu0 0.0
      %1363 = vmatpush1.msra.mxu0 0.0
      %1364 = vmatprep.subr.mxu0 0.0
      %1365 = vmatpush1.msra.mxu0 0.0
      %1366 = vmatprep.subr.mxu0 0.0
      %1367 = vmatpush1.msra.mxu0 0.0
      %1368 = vmatprep.subr.mxu0 0.0
      %1369 = vmatpush1.msra.mxu0 0.0
      %1370 = vmatprep.subr.mxu0 0.0
      %1371 = vmatpush1.msra.mxu0 0.0
      %1372 = vmatprep.subr.mxu0 0.0
      %1373 = vmatpush1.msra.mxu0 0.0
      %1374 = vmatprep.subr.mxu0 0.0
      %1375 = vmatpush1.msra.mxu0 0.0
      %1376 = vmatprep.subr.mxu0 0.0
      %1377 = vmatpush1.msra.mxu0 0.0
      %1378 = vmatprep.subr.mxu0 0.0
      %1379 = vmatpush1.msra.mxu0 0.0
      %1380 = vmatprep.subr.mxu0 0.0
      %1381 = vmatpush1.msra.mxu0 0.0
      %1382 = vmatprep.subr.mxu0 0.0
      %1383 = vmatpush1.msra.mxu0 0.0
      %1384 = vmatprep.subr.mxu0 0.0
      %1385 = vmatpush1.msra.mxu0 0.0
      %1386 = vmatprep.subr.mxu0 0.0
      %1387 = vmatpush1.msra.mxu0 0.0
      %1388 = vmatprep.subr.mxu0 0.0
      %1389 = vmatpush1.msra.mxu0 0.0
      %1390 = vmatprep.subr.mxu0 0.0
      %1391 = vmatpush1.msra.mxu0 0.0
      %1392 = vmatprep.subr.mxu0 0.0
      %1393 = vmatpush1.msra.mxu0 0.0
      %1394 = vmatprep.subr.mxu0 0.0
      %1395 = vmatpush1.msra.mxu0 0.0
      %1396 = vmatprep.subr.mxu0 0.0
      %1397 = vmatpush1.msra.mxu0 0.0
      %1398 = vmatprep.subr.mxu0 0.0
      %1399 = vmatpush1.msra.mxu0 0.0
      %1400 = vmatprep.subr.mxu0 0.0
      %1401 = vmatpush1.msra.mxu0 0.0
      %1402 = vmatprep.subr.mxu0 0.0
      %1403 = vmatpush1.msra.mxu0 0.0
      %1404 = vmatprep.subr.mxu0 0.0
      %1405 = vmatpush1.msra.mxu0 0.0
      %1406 = vmatprep.subr.mxu0 0.0
      %1407 = vmatpush1.msra.mxu0 0.0
      %1408 = vmatprep.subr.mxu0 0.0
      %1409 = vmatpush1.msra.mxu0 0.0
      %1410 = vmatprep.subr.mxu0 0.0
      %1411 = vmatpush1.msra.mxu0 0.0
      %1412 = vmatprep.subr.mxu0 0.0
      %1413 = vmatpush1.msra.mxu0 0.0
      %1414 = vmatprep.mubr.f32.mxu0 0.0
      %1415 = vmatmul.mubr.f32.gmra.mrb[0].mxu0 %v1262
      %v1416 = vpop.f32.mrb[0].mxu0
      %v1417 = vadd.f32 0.0, %v1416
      %v1418 = vpop.f32.mrb[0].mxu0
      %1419 = vmatprep.mubr.f32.mxu0 0.0
      %1420 = vmatmul.mubr.f32.gmra.mrb[0].mxu0 %v1265
      %v1421 = vpop.f32.mrb[0].mxu0
      %v1422 = vadd.f32 0.0, %v1421
      %v1423 = vpop.f32.mrb[0].mxu0
      %1424 = vdwg.mxu0
      %v1425 = vadd.f32 %v1243, %v1340
      %v1426 = vadd.f32 %v1244, %v1342
      %v1427 = vadd.f32 %v1245, %v1417
      %v1428 = vadd.f32 %v1246, %v1346
      %v1429 = vadd.f32 %v1247, %v1348
      %v1430 = vadd.f32 %v1248, %v1422
      %s1431 = scalar_lea.vmem %s1, 112
      %v1432 = vld [vmem:[%s1431] sm:$0xff]
      %v1433 = vld [vmem:[%s1431 + $0x8] sm:$0xff]
      %1434 = vrot.lane.b32.xlu0 %v171, 91
      %v1435 = vpop.permute.xlu0 %1434
      %1436 = vrot.lane.b32.xlu0 %v172, 91
      %v1437 = vpop.permute.xlu0 %1436
      %1438 = vrot.lane.b32.xlu0 %v173, 91
      %v1439 = vpop.permute.xlu0 %1438
      %vm1440 = vcmask 744448
      %v1441 = vsel %vm1440, %v1435, %v1437
      %v1442 = vsel %vm1440, %v1437, %v1439
      %v1444 = vsel %vm191, %v1432, 0
      %v1447 = vsel %vm191, %v1433, 0
      %v1449 = vsel %vm198, %v1441, 0
      %v1451 = vsel %vm198, %v1442, 0
      %v1453 = vsel %vm198, %v1439, 0
      %1455 = vmatprep.subr.mxu0 %v1451
      %1456 = vmatpush1.msra.mxu0 %v1449
      %1457 = vmatprep.subr.mxu0 0.0
      %1458 = vmatpush1.msra.mxu0 0.0
      %1459 = vmatprep.subr.mxu0 0.0
      %1460 = vmatpush1.msra.mxu0 0.0
      %1461 = vmatprep.subr.mxu0 0.0
      %1462 = vmatpush1.msra.mxu0 0.0
      %1463 = vmatprep.subr.mxu0 0.0
      %1464 = vmatpush1.msra.mxu0 0.0
      %1465 = vmatprep.subr.mxu0 0.0
      %1466 = vmatpush1.msra.mxu0 0.0
      %1467 = vmatprep.subr.mxu0 0.0
      %1468 = vmatpush1.msra.mxu0 0.0
      %1469 = vmatprep.subr.mxu0 0.0
      %1470 = vmatpush1.msra.mxu0 0.0
      %1471 = vmatprep.subr.mxu0 0.0
      %1472 = vmatpush1.msra.mxu0 0.0
      %1473 = vmatprep.subr.mxu0 0.0
      %1474 = vmatpush1.msra.mxu0 0.0
      %1475 = vmatprep.subr.mxu0 0.0
      %1476 = vmatpush1.msra.mxu0 0.0
      %1477 = vmatprep.subr.mxu0 0.0
      %1478 = vmatpush1.msra.mxu0 0.0
      %1479 = vmatprep.subr.mxu0 0.0
      %1480 = vmatpush1.msra.mxu0 0.0
      %1481 = vmatprep.subr.mxu0 0.0
      %1482 = vmatpush1.msra.mxu0 0.0
      %1483 = vmatprep.subr.mxu0 0.0
      %1484 = vmatpush1.msra.mxu0 0.0
      %1485 = vmatprep.subr.mxu0 0.0
      %1486 = vmatpush1.msra.mxu0 0.0
      %1487 = vmatprep.subr.mxu0 0.0
      %1488 = vmatpush1.msra.mxu0 0.0
      %1489 = vmatprep.subr.mxu0 0.0
      %1490 = vmatpush1.msra.mxu0 0.0
      %1491 = vmatprep.subr.mxu0 0.0
      %1492 = vmatpush1.msra.mxu0 0.0
      %1493 = vmatprep.subr.mxu0 0.0
      %1494 = vmatpush1.msra.mxu0 0.0
      %1495 = vmatprep.subr.mxu0 0.0
      %1496 = vmatpush1.msra.mxu0 0.0
      %1497 = vmatprep.subr.mxu0 0.0
      %1498 = vmatpush1.msra.mxu0 0.0
      %1499 = vmatprep.subr.mxu0 0.0
      %1500 = vmatpush1.msra.mxu0 0.0
      %1501 = vmatprep.subr.mxu0 0.0
      %1502 = vmatpush1.msra.mxu0 0.0
      %1503 = vmatprep.subr.mxu0 0.0
      %1504 = vmatpush1.msra.mxu0 0.0
      %1505 = vmatprep.subr.mxu0 0.0
      %1506 = vmatpush1.msra.mxu0 0.0
      %1507 = vmatprep.subr.mxu0 0.0
      %1508 = vmatpush1.msra.mxu0 0.0
      %1509 = vmatprep.subr.mxu0 0.0
      %1510 = vmatpush1.msra.mxu0 0.0
      %1511 = vmatprep.subr.mxu0 0.0
      %1512 = vmatpush1.msra.mxu0 0.0
      %1513 = vmatprep.subr.mxu0 0.0
      %1514 = vmatpush1.msra.mxu0 0.0
      %1515 = vmatprep.subr.mxu0 0.0
      %1516 = vmatpush1.msra.mxu0 0.0
      %1517 = vmatprep.subr.mxu0 0.0
      %1518 = vmatpush1.msra.mxu0 0.0
      %1519 = vmatprep.mubr.f32.mxu0 0.0
      %1520 = vmatmul.mubr.f32.gmra.mrb[0].mxu0 %v1444
      %v1521 = vpop.f32.mrb[0].mxu0
      %v1522 = vadd.f32 0.0, %v1521
      %v1523 = vpop.f32.mrb[0].mxu0
      %v1524 = vadd.f32 0.0, %v1523
      %1525 = vmatprep.mubr.f32.mxu0 0.0
      %1526 = vmatmul.mubr.f32.gmra.mrb[0].mxu0 %v1447
      %v1527 = vpop.f32.mrb[0].mxu0
      %v1528 = vadd.f32 0.0, %v1527
      %v1529 = vpop.f32.mrb[0].mxu0
      %v1530 = vadd.f32 0.0, %v1529
      %1531 = vdwg.mxu0
      %1532 = vmatprep.subr.mxu0 0.0
      %1533 = vmatpush1.msra.mxu0 %v1453
      %1534 = vmatprep.subr.mxu0 0.0
      %1535 = vmatpush1.msra.mxu0 0.0
      %1536 = vmatprep.subr.mxu0 0.0
      %1537 = vmatpush1.msra.mxu0 0.0
      %1538 = vmatprep.subr.mxu0 0.0
      %1539 = vmatpush1.msra.mxu0 0.0
      %1540 = vmatprep.subr.mxu0 0.0
      %1541 = vmatpush1.msra.mxu0 0.0
      %1542 = vmatprep.subr.mxu0 0.0
      %1543 = vmatpush1.msra.mxu0 0.0
      %1544 = vmatprep.subr.mxu0 0.0
      %1545 = vmatpush1.msra.mxu0 0.0
      %1546 = vmatprep.subr.mxu0 0.0
      %1547 = vmatpush1.msra.mxu0 0.0
      %1548 = vmatprep.subr.mxu0 0.0
      %1549 = vmatpush1.msra.mxu0 0.0
      %1550 = vmatprep.subr.mxu0 0.0
      %1551 = vmatpush1.msra.mxu0 0.0
      %1552 = vmatprep.subr.mxu0 0.0
      %1553 = vmatpush1.msra.mxu0 0.0
      %1554 = vmatprep.subr.mxu0 0.0
      %1555 = vmatpush1.msra.mxu0 0.0
      %1556 = vmatprep.subr.mxu0 0.0
      %1557 = vmatpush1.msra.mxu0 0.0
      %1558 = vmatprep.subr.mxu0 0.0
      %1559 = vmatpush1.msra.mxu0 0.0
      %1560 = vmatprep.subr.mxu0 0.0
      %1561 = vmatpush1.msra.mxu0 0.0
      %1562 = vmatprep.subr.mxu0 0.0
      %1563 = vmatpush1.msra.mxu0 0.0
      %1564 = vmatprep.subr.mxu0 0.0
      %1565 = vmatpush1.msra.mxu0 0.0
      %1566 = vmatprep.subr.mxu0 0.0
      %1567 = vmatpush1.msra.mxu0 0.0
      %1568 = vmatprep.subr.mxu0 0.0
      %1569 = vmatpush1.msra.mxu0 0.0
      %1570 = vmatprep.subr.mxu0 0.0
      %1571 = vmatpush1.msra.mxu0 0.0
      %1572 = vmatprep.subr.mxu0 0.0
      %1573 = vmatpush1.msra.mxu0 0.0
      %1574 = vmatprep.subr.mxu0 0.0
      %1575 = vmatpush1.msra.mxu0 0.0
      %1576 = vmatprep.subr.mxu0 0.0
      %1577 = vmatpush1.msra.mxu0 0.0
      %1578 = vmatprep.subr.mxu0 0.0
      %1579 = vmatpush1.msra.mxu0 0.0
      %1580 = vmatprep.subr.mxu0 0.0
      %1581 = vmatpush1.msra.mxu0 0.0
      %1582 = vmatprep.subr.mxu0 0.0
      %1583 = vmatpush1.msra.mxu0 0.0
      %1584 = vmatprep.subr.mxu0 0.0
      %1585 = vmatpush1.msra.mxu0 0.0
      %1586 = vmatprep.subr.mxu0 0.0
      %1587 = vmatpush1.msra.mxu0 0.0
      %1588 = vmatprep.subr.mxu0 0.0
      %1589 = vmatpush1.msra.mxu0 0.0
      %1590 = vmatprep.subr.mxu0 0.0
      %1591 = vmatpush1.msra.mxu0 0.0
      %1592 = vmatprep.subr.mxu0 0.0
      %1593 = vmatpush1.msra.mxu0 0.0
      %1594 = vmatprep.subr.mxu0 0.0
      %1595 = vmatpush1.msra.mxu0 0.0
      %1596 = vmatprep.mubr.f32.mxu0 0.0
      %1597 = vmatmul.mubr.f32.gmra.mrb[0].mxu0 %v1444
      %v1598 = vpop.f32.mrb[0].mxu0
      %v1599 = vadd.f32 0.0, %v1598
      %v1600 = vpop.f32.mrb[0].mxu0
      %1601 = vmatprep.mubr.f32.mxu0 0.0
      %1602 = vmatmul.mubr.f32.gmra.mrb[0].mxu0 %v1447
      %v1603 = vpop.f32.mrb[0].mxu0
      %v1604 = vadd.f32 0.0, %v1603
      %v1605 = vpop.f32.mrb[0].mxu0
      %1606 = vdwg.mxu0
      %v1607 = vadd.f32 %v1425, %v1522
      %v1608 = vadd.f32 %v1426, %v1524
      %v1609 = vadd.f32 %v1427, %v1599
      %v1610 = vadd.f32 %v1428, %v1528
      %v1611 = vadd.f32 %v1429, %v1530
      %v1612 = vadd.f32 %v1430, %v1604
      %s1613 = scalar_lea.vmem %s1, 128
      %v1614 = vld [vmem:[%s1613] sm:$0xff]
      %v1615 = vld [vmem:[%s1613 + $0x8] sm:$0xff]
      %1616 = vrot.lane.b32.xlu0 %v171, 90
      %v1617 = vpop.permute.xlu0 %1616
      %1618 = vrot.lane.b32.xlu0 %v172, 90
      %v1619 = vpop.permute.xlu0 %1618
      %1620 = vrot.lane.b32.xlu0 %v173, 90
      %v1621 = vpop.permute.xlu0 %1620
      %vm1622 = vcmask 736256
      %v1623 = vsel %vm1622, %v1617, %v1619
      %v1624 = vsel %vm1622, %v1619, %v1621
      %v1626 = vsel %vm191, %v1614, 0
      %v1629 = vsel %vm191, %v1615, 0
      %v1631 = vsel %vm198, %v1623, 0
      %v1633 = vsel %vm198, %v1624, 0
      %v1635 = vsel %vm198, %v1621, 0
      %1637 = vmatprep.subr.mxu0 %v1633
      %1638 = vmatpush1.msra.mxu0 %v1631
      %1639 = vmatprep.subr.mxu0 0.0
      %1640 = vmatpush1.msra.mxu0 0.0
      %1641 = vmatprep.subr.mxu0 0.0
      %1642 = vmatpush1.msra.mxu0 0.0
      %1643 = vmatprep.subr.mxu0 0.0
      %1644 = vmatpush1.msra.mxu0 0.0
      %1645 = vmatprep.subr.mxu0 0.0
      %1646 = vmatpush1.msra.mxu0 0.0
      %1647 = vmatprep.subr.mxu0 0.0
      %1648 = vmatpush1.msra.mxu0 0.0
      %1649 = vmatprep.subr.mxu0 0.0
      %1650 = vmatpush1.msra.mxu0 0.0
      %1651 = vmatprep.subr.mxu0 0.0
      %1652 = vmatpush1.msra.mxu0 0.0
      %1653 = vmatprep.subr.mxu0 0.0
      %1654 = vmatpush1.msra.mxu0 0.0
      %1655 = vmatprep.subr.mxu0 0.0
      %1656 = vmatpush1.msra.mxu0 0.0
      %1657 = vmatprep.subr.mxu0 0.0
      %1658 = vmatpush1.msra.mxu0 0.0
      %1659 = vmatprep.subr.mxu0 0.0
      %1660 = vmatpush1.msra.mxu0 0.0
      %1661 = vmatprep.subr.mxu0 0.0
      %1662 = vmatpush1.msra.mxu0 0.0
      %1663 = vmatprep.subr.mxu0 0.0
      %1664 = vmatpush1.msra.mxu0 0.0
      %1665 = vmatprep.subr.mxu0 0.0
      %1666 = vmatpush1.msra.mxu0 0.0
      %1667 = vmatprep.subr.mxu0 0.0
      %1668 = vmatpush1.msra.mxu0 0.0
      %1669 = vmatprep.subr.mxu0 0.0
      %1670 = vmatpush1.msra.mxu0 0.0
      %1671 = vmatprep.subr.mxu0 0.0
      %1672 = vmatpush1.msra.mxu0 0.0
      %1673 = vmatprep.subr.mxu0 0.0
      %1674 = vmatpush1.msra.mxu0 0.0
      %1675 = vmatprep.subr.mxu0 0.0
      %1676 = vmatpush1.msra.mxu0 0.0
      %1677 = vmatprep.subr.mxu0 0.0
      %1678 = vmatpush1.msra.mxu0 0.0
      %1679 = vmatprep.subr.mxu0 0.0
      %1680 = vmatpush1.msra.mxu0 0.0
      %1681 = vmatprep.subr.mxu0 0.0
      %1682 = vmatpush1.msra.mxu0 0.0
      %1683 = vmatprep.subr.mxu0 0.0
      %1684 = vmatpush1.msra.mxu0 0.0
      %1685 = vmatprep.subr.mxu0 0.0
      %1686 = vmatpush1.msra.mxu0 0.0
      %1687 = vmatprep.subr.mxu0 0.0
      %1688 = vmatpush1.msra.mxu0 0.0
      %1689 = vmatprep.subr.mxu0 0.0
      %1690 = vmatpush1.msra.mxu0 0.0
      %1691 = vmatprep.subr.mxu0 0.0
      %1692 = vmatpush1.msra.mxu0 0.0
      %1693 = vmatprep.subr.mxu0 0.0
      %1694 = vmatpush1.msra.mxu0 0.0
      %1695 = vmatprep.subr.mxu0 0.0
      %1696 = vmatpush1.msra.mxu0 0.0
      %1697 = vmatprep.subr.mxu0 0.0
      %1698 = vmatpush1.msra.mxu0 0.0
      %1699 = vmatprep.subr.mxu0 0.0
      %1700 = vmatpush1.msra.mxu0 0.0
      %1701 = vmatprep.mubr.f32.mxu0 0.0
      %1702 = vmatmul.mubr.f32.gmra.mrb[0].mxu0 %v1626
      %v1703 = vpop.f32.mrb[0].mxu0
      %v1704 = vadd.f32 0.0, %v1703
      %v1705 = vpop.f32.mrb[0].mxu0
      %v1706 = vadd.f32 0.0, %v1705
      %1707 = vmatprep.mubr.f32.mxu0 0.0
      %1708 = vmatmul.mubr.f32.gmra.mrb[0].mxu0 %v1629
      %v1709 = vpop.f32.mrb[0].mxu0
      %v1710 = vadd.f32 0.0, %v1709
      %v1711 = vpop.f32.mrb[0].mxu0
      %v1712 = vadd.f32 0.0, %v1711
      %1713 = vdwg.mxu0
      %1714 = vmatprep.subr.mxu0 0.0
      %1715 = vmatpush1.msra.mxu0 %v1635
      %1716 = vmatprep.subr.mxu0 0.0
      %1717 = vmatpush1.msra.mxu0 0.0
      %1718 = vmatprep.subr.mxu0 0.0
      %1719 = vmatpush1.msra.mxu0 0.0
      %1720 = vmatprep.subr.mxu0 0.0
      %1721 = vmatpush1.msra.mxu0 0.0
      %1722 = vmatprep.subr.mxu0 0.0
      %1723 = vmatpush1.msra.mxu0 0.0
      %1724 = vmatprep.subr.mxu0 0.0
      %1725 = vmatpush1.msra.mxu0 0.0
      %1726 = vmatprep.subr.mxu0 0.0
      %1727 = vmatpush1.msra.mxu0 0.0
      %1728 = vmatprep.subr.mxu0 0.0
      %1729 = vmatpush1.msra.mxu0 0.0
      %1730 = vmatprep.subr.mxu0 0.0
      %1731 = vmatpush1.msra.mxu0 0.0
      %1732 = vmatprep.subr.mxu0 0.0
      %1733 = vmatpush1.msra.mxu0 0.0
      %1734 = vmatprep.subr.mxu0 0.0
      %1735 = vmatpush1.msra.mxu0 0.0
      %1736 = vmatprep.subr.mxu0 0.0
      %1737 = vmatpush1.msra.mxu0 0.0
      %1738 = vmatprep.subr.mxu0 0.0
      %1739 = vmatpush1.msra.mxu0 0.0
      %1740 = vmatprep.subr.mxu0 0.0
      %1741 = vmatpush1.msra.mxu0 0.0
      %1742 = vmatprep.subr.mxu0 0.0
      %1743 = vmatpush1.msra.mxu0 0.0
      %1744 = vmatprep.subr.mxu0 0.0
      %1745 = vmatpush1.msra.mxu0 0.0
      %1746 = vmatprep.subr.mxu0 0.0
      %1747 = vmatpush1.msra.mxu0 0.0
      %1748 = vmatprep.subr.mxu0 0.0
      %1749 = vmatpush1.msra.mxu0 0.0
      %1750 = vmatprep.subr.mxu0 0.0
      %1751 = vmatpush1.msra.mxu0 0.0
      %1752 = vmatprep.subr.mxu0 0.0
      %1753 = vmatpush1.msra.mxu0 0.0
      %1754 = vmatprep.subr.mxu0 0.0
      %1755 = vmatpush1.msra.mxu0 0.0
      %1756 = vmatprep.subr.mxu0 0.0
      %1757 = vmatpush1.msra.mxu0 0.0
      %1758 = vmatprep.subr.mxu0 0.0
      %1759 = vmatpush1.msra.mxu0 0.0
      %1760 = vmatprep.subr.mxu0 0.0
      %1761 = vmatpush1.msra.mxu0 0.0
      %1762 = vmatprep.subr.mxu0 0.0
      %1763 = vmatpush1.msra.mxu0 0.0
      %1764 = vmatprep.subr.mxu0 0.0
      %1765 = vmatpush1.msra.mxu0 0.0
      %1766 = vmatprep.subr.mxu0 0.0
      %1767 = vmatpush1.msra.mxu0 0.0
      %1768 = vmatprep.subr.mxu0 0.0
      %1769 = vmatpush1.msra.mxu0 0.0
      %1770 = vmatprep.subr.mxu0 0.0
      %1771 = vmatpush1.msra.mxu0 0.0
      %1772 = vmatprep.subr.mxu0 0.0
      %1773 = vmatpush1.msra.mxu0 0.0
      %1774 = vmatprep.subr.mxu0 0.0
      %1775 = vmatpush1.msra.mxu0 0.0
      %1776 = vmatprep.subr.mxu0 0.0
      %1777 = vmatpush1.msra.mxu0 0.0
      %1778 = vmatprep.mubr.f32.mxu0 0.0
      %1779 = vmatmul.mubr.f32.gmra.mrb[0].mxu0 %v1626
      %v1780 = vpop.f32.mrb[0].mxu0
      %v1781 = vadd.f32 0.0, %v1780
      %v1782 = vpop.f32.mrb[0].mxu0
      %1783 = vmatprep.mubr.f32.mxu0 0.0
      %1784 = vmatmul.mubr.f32.gmra.mrb[0].mxu0 %v1629
      %v1785 = vpop.f32.mrb[0].mxu0
      %v1786 = vadd.f32 0.0, %v1785
      %v1787 = vpop.f32.mrb[0].mxu0
      %1788 = vdwg.mxu0
      %v1789 = vadd.f32 %v1607, %v1704
      %v1790 = vadd.f32 %v1608, %v1706
      %v1791 = vadd.f32 %v1609, %v1781
      %v1792 = vadd.f32 %v1610, %v1710
      %v1793 = vadd.f32 %v1611, %v1712
      %v1794 = vadd.f32 %v1612, %v1786
      %v1795 = vld [vmem:[%s2] sm:$0xff]
      %v1796 = vld [vmem:[%s2 + $0x8] sm:$0xff]
      %1798 = vset.pattern.permute.xlu0 0
      %1799 = vperm.xlu0 %1798, %v1795
      %v1800 = vpop.permute.xlu0 %1799
      %1803 = vset.pattern.permute.xlu0 0
      %1804 = vperm.xlu0 %1803, %v1796
      %v1805 = vpop.permute.xlu0 %1804
      %v1807 = vadd.f32 %v1789, %v1800
      %v1808 = vadd.f32 %v1790, %v1800
      %v1809 = vadd.f32 %v1791, %v1800
      %v1810 = vadd.f32 %v1792, %v1805
      %v1811 = vadd.f32 %v1793, %v1805
      %v1812 = vadd.f32 %v1794, %v1805
      %v1813 = vmax.f32 %v1807, 0.0
      %v1814 = vmax.f32 %v1808, 0.0
      %v1815 = vmax.f32 %v1809, 0.0
      %v1816 = vmax.f32 %v1810, 0.0
      %v1817 = vmax.f32 %v1811, 0.0
      %v1818 = vmax.f32 %v1812, 0.0
      %1819 = vst [vmem:[%s170] sm:$0xff] %v1813
      %1820 = vst [vmem:[%s170 + $0x8] sm:$0xff] %v1814
      %vm1821 = vcmask 556032
      %1822 = vst.msk [vmem:[%s170 + $0x10] sm:$0xff] %vm1821, %v1815
      %1823 = vst [vmem:[%s170 + $0x18] sm:$0xff] %v1816
      %1824 = vst [vmem:[%s170 + $0x20] sm:$0xff] %v1817
      %1825 = vst.msk [vmem:[%s170 + $0x28] sm:$0xff] %vm1821, %v1818
      %p1826 = scmp.lt.s32.totalorder %s14, 1
      %s1827 = scalar_select %p1826, %s14, 1
      %s1828 = smul.addr %s1827, 6
      %s1829 = smul.addr %s1828, 8
      %s1830 = scalar_lea.vmem %s3, %s1829
      // Predicated region
      $region33: #{fea_model_forward.1} parent=31 // pred_check
        %p1831 = pneg %p100
      $region34: #{fea_model_forward.1} parent=31 // pred_check_branch
        %1833 = sbr.rel (%p1831) target = $region36
      $region35: #{fea_model_forward.1} parent=31 // pred_region
        _
      $region36: #{fea_model_forward.1} parent=31 // pred_fallthru
        _
    $region32: #{fea_model_forward.1} parent=5 // pred_fallthru
      _
    %p1834 = scmp.le.s32.totalorder 2, %s9
    // Predicated region
    $region37: #{fea_model_forward.1} parent=5 // pred_check
      %p1835 = pneg %p1834
    $region38: #{fea_model_forward.1} parent=5 // pred_check_branch
      %1837 = sbr.rel (%p1835) target = $region40
    $region39: #{fea_model_forward.1} parent=5 // pred_region
      %s1838 = ssub.s32 %s9, 2
      // Predicated region
      $region41: #{fea_model_forward.1} parent=39 // pred_check
        %p1839 = pneg %p106
      $region42: #{fea_model_forward.1} parent=39 // pred_check_branch
        %1841 = sbr.rel (%p1839) target = $region44
      $region43: #{fea_model_forward.1} parent=39 // pred_region
        %p1842 = scmp.lt.s32.totalorder %s15, 1
        %s1843 = scalar_select %p1842, %s15, 1
        %s1844 = smul.addr %s1843, 6
        %s1845 = smul.addr %s1844, 8
        %s1846 = scalar_lea.vmem %s3, %s1845
      $region44: #{fea_model_forward.1} parent=39 // pred_fallthru
        _
    $region40: #{fea_model_forward.1} parent=5 // pred_fallthru
      _
  $region6: #{fea_model_forward.1} parent=0 // loop_footer
    %s13 = sadd.s32 1, %s9
  $region7: #{fea_model_forward.1} parent=0 // loop_footer_branch
    %8 = sbr.rel target = $region3
  $region8: #{fea_model_forward.1} parent=0 // loop_exit
    _

</llo_original>
